<compile_context>
chip_gen: v7x
topology: tpu7x:2x2x1
jax: 0.10.0
libtpu: 0.0.40
codegen_flags: <defaults>
</compile_context>

<pallas_src>
import functools
import math

import jax
import jax.numpy as jnp
from jax import lax
from jax.experimental import pallas as pl
from jax.experimental.pallas import tpu as pltpu

# Finite "minus infinity": avoids inf-inf NaNs if a row were ever fully masked.
NEG_INF = -1e30
LANES = 128  # lane width; online-softmax stats are kept lane-dense


def _vmem_limit_bytes():
    """Scoped-VMEM budget derived from the actual generation (v7x: 64 MiB physical,
    v5e/v6e: 128 MiB).  Falls back to a conservative 48 MiB if the query fails."""
    try:
        cap = int(pltpu.get_tpu_info().vmem_capacity_bytes)
        return max(32 * 1024 * 1024, min(cap * 3 // 4, 100 * 1024 * 1024))
    except Exception:
        return 48 * 1024 * 1024


def _pick_tile(T, pref=256):
    # Largest tile from {pref, 256, 128, ..., 8} that divides T.  256 fills the
    # 2x256^2 MXU on v6e/v7x; on v5e (4x128^2) 128 is already a perfect fit.
    for t in (pref, 256, 128, 64, 32, 16, 8):
        if t <= T and T % t == 0:
            return t
    return T


# ----------------------------- in-kernel helpers -----------------------------

def _layernorm(x, g, b, eps=1e-5):
    # mean/var/normalization kept in f32 (v5e VPU/EUP have no bf16).
    mu = jnp.mean(x, axis=-1, keepdims=True)
    xc = x - mu
    var = jnp.mean(xc * xc, axis=-1, keepdims=True)
    return xc * lax.rsqrt(var + eps) * g + b


def _gelu_tanh(x):
    # nn.GELU(approximate='tanh'), computed in f32.
    c = math.sqrt(2.0 / math.pi)
    return 0.5 * x * (1.0 + jnp.tanh(c * (x + 0.044715 * x * x * x)))


# --------------------------- kernel 1: ln_1 + QKV -----------------------------

def _ln_qkv_kernel(x_ref, g_ref, b_ref, wq_ref, wk_ref, wv_ref,
                   bq_ref, bk_ref, bv_ref, q_ref, k_ref, v_ref):
    x = x_ref[0].astype(jnp.float32)                      # (tr, C)
    h = _layernorm(x, g_ref[0], b_ref[0])                 # f32 stats
    hb = h.astype(wq_ref.dtype)                           # bf16 MXU operand
    # The attention scale 1/sqrt(D) is already folded into wq/bq by the wrapper.
    q_ref[0] = (jnp.dot(hb, wq_ref[...], preferred_element_type=jnp.float32)
                + bq_ref[0]).astype(q_ref.dtype)
    k_ref[0] = (jnp.dot(hb, wk_ref[...], preferred_element_type=jnp.float32)
                + bk_ref[0]).astype(k_ref.dtype)
    v_ref[0] = (jnp.dot(hb, wv_ref[...], preferred_element_type=jnp.float32)
                + bv_ref[0]).astype(v_ref.dtype)


# ----------------------- kernel 2: causal flash attention ---------------------

def _flash_attn_kernel(q_ref, k_ref, v_ref, o_ref, m_ref, l_ref, acc_ref, *,
                       n_head):
    # grid = (B, num_q_tiles, num_kv_tiles); kv axis innermost ("arbitrary").
    # Blocks arrive in lane-dense (tile, C) layout; heads are split with static
    # lane slices (no HBM transposes, no in-kernel reshapes of the lane dim).
    qi = pl.program_id(1)
    kj = pl.program_id(2)
    tq = q_ref.shape[1]
    tk = k_ref.shape[1]
    C = q_ref.shape[2]
    H = n_head
    D = C // H
    q_start = qi * tq
    k_start = kj * tk
    q_last = q_start + tq - 1

    @pl.when(kj == 0)
    def _init():
        m_ref[...] = jnp.full(m_ref.shape, NEG_INF, dtype=jnp.float32)
        l_ref[...] = jnp.zeros(l_ref.shape, dtype=jnp.float32)
        acc_ref[...] = jnp.zeros(acc_ref.shape, dtype=jnp.float32)

    def _update(keep):
        qb = q_ref[0]                                      # (tq, C) bf16, pre-scaled
        kb = k_ref[0]                                      # (tk, C) bf16
        vb = v_ref[0]                                      # (tk, C) bf16
        for h in range(H):                                 # static unroll over heads
            lo, hi = h * D, (h + 1) * D
            qh = qb[:, lo:hi]                              # (tq, D)
            kh = kb[:, lo:hi]                              # (tk, D)
            vh = vb[:, lo:hi]                              # (tk, D)
            # Contract head_dim on both operands: q @ k^T without materializing k^T.
            s = lax.dot_general(qh, kh, (((1,), (1,)), ((), ())),
                                preferred_element_type=jnp.float32)   # (tq, tk)
            if keep is not None:                           # only the diagonal branch
                s = jnp.where(keep, s, NEG_INF)
            m_prev = m_ref[h][:, 0:1]                      # (tq, 1) f32
            l_prev = l_ref[h][:, 0:1]
            m_new = jnp.maximum(m_prev, jnp.max(s, axis=-1, keepdims=True))
            alpha = jnp.exp(m_prev - m_new)
            p = jnp.exp(s - m_new)
            l_new = alpha * l_prev + jnp.sum(p, axis=-1, keepdims=True)
            acc_ref[h] = alpha * acc_ref[h] + jnp.dot(
                p.astype(vh.dtype), vh, preferred_element_type=jnp.float32)
            # Lane-dense stats stores (broadcast across 128 lanes).
            m_ref[h] = jnp.broadcast_to(m_new, (tq, LANES))
            l_ref[h] = jnp.broadcast_to(l_new, (tq, LANES))

    # Tile intersects the causal diagonal -> build and apply the mask.
    @pl.when((k_start <= q_last) & (k_start + tk - 1 > q_start))
    def _diag_tile():
        row = q_start + lax.broadcasted_iota(jnp.int32, (tq, tk), 0)
        col = k_start + lax.broadcasted_iota(jnp.int32, (tq, tk), 1)
        _update(col <= row)

    # Tile strictly below the diagonal -> no mask work at all.
    @pl.when(k_start + tk - 1 <= q_start)
    def _below_tile():
        _update(None)

    # (Tiles strictly above the diagonal do nothing; their K/V DMA is also skipped
    #  because the wrapper clamps the K/V index_maps to the diagonal.)

    last_kj = q_last // tk

    @pl.when(kj == last_kj)
    def _finalize():
        outs = []
        for h in range(H):
            inv_l = pl.reciprocal(l_ref[h][:, 0:1], approx=True)   # EUP
            outs.append(acc_ref[h] * inv_l)                        # (tq, D) f32
        # Single lane-dense (tq, C) store; (B, T, C) output needs no merge transpose.
        o_ref[0] = jnp.concatenate(outs, axis=-1).astype(o_ref.dtype)


# ----------------------- kernel 3: out-proj + ln_2 + MLP ----------------------

def _proj_mlp_kernel(y_ref, wproj_ref, bproj_ref, g2_ref, b2_ref,
                     wfc_ref, bfc_ref, wp2_ref, bp2_ref, o_ref):
    y = y_ref[0]                                          # (tr, C) bf16
    attn = jnp.dot(y, wproj_ref[...],
                   preferred_element_type=jnp.float32) + bproj_ref[0]
    # NOTE: the reference Block.forward has NO residual connections.
    h2 = _layernorm(attn, g2_ref[0], b2_ref[0])           # f32
    f = jnp.dot(h2.astype(wfc_ref.dtype), wfc_ref[...],
                preferred_element_type=jnp.float32) + bfc_ref[0]
    f = _gelu_tanh(f)                                     # f32 elementwise
    out = jnp.dot(f.astype(wp2_ref.dtype), wp2_ref[...],
                  preferred_element_type=jnp.float32) + bp2_ref[0]
    o_ref[0] = out.astype(o_ref.dtype)


# --------------------------------- wrapper -----------------------------------

def gpt2_block(x, params, n_head, *, row_tile=None, q_tile=None, kv_tile=None,
               buffered_weights=True):
    """Forward pass of the (residual-free) GPT-2 Block via three Pallas kernels.

    x: (B, T, C) float32.  params: dict of weights in 'x @ W' layout (see main).
    """
    B, T, C = x.shape
    H = n_head
    assert C % H == 0
    D = C // H

    tr = row_tile or _pick_tile(T)        # row tile for LN/QKV and MLP kernels
    tq = q_tile or _pick_tile(T)          # attention q tile
    tk = kv_tile or _pick_tile(T)         # attention kv tile
    assert T % tr == 0 and T % tq == 0 and T % tk == 0

    vmem_limit = _vmem_limit_bytes()

    # ---- weight prep (once, outside the kernels) -----------------------------
    # Split c_attn into Q/K/V, fold 1/sqrt(head_dim) into the Q columns, and ship
    # matmul weights in bf16 (biases / LayerNorm params stay f32).
    scale = 1.0 / math.sqrt(D)
    w_qkv, b_qkv = params["w_qkv"], params["b_qkv"]
    w_q = (w_qkv[:, :C] * scale).astype(jnp.bfloat16)
    w_k = w_qkv[:, C:2 * C].astype(jnp.bfloat16)
    w_v = w_qkv[:, 2 * C:].astype(jnp.bfloat16)
    b_q = b_qkv[:, :C] * scale
    b_k = b_qkv[:, C:2 * C]
    b_v = b_qkv[:, 2 * C:]
    w_proj = params["w_proj"].astype(jnp.bfloat16)
    w_fc = params["w_fc"].astype(jnp.bfloat16)
    w_p2 = params["w_proj2"].astype(jnp.bfloat16)

    # bf16 activations across kernel boundaries (halves activation DMA; LN stats
    # stay f32 inside the kernels).
    x_bf16 = x.astype(jnp.bfloat16)

    # Weight block indices never change across the grid -> single-buffer them so
    # they are resident once instead of double-buffered (halves weight VMEM).
    pm = {"pipeline_mode": pl.Buffered(1)} if buffered_weights else {}

    def wspec(arr):
        nd = arr.ndim
        return pl.BlockSpec(arr.shape, lambda b, i: (0,) * nd, **pm)

    cparams_rows = pltpu.CompilerParams(
        dimension_semantics=("parallel", "parallel"),
        vmem_limit_bytes=vmem_limit)

    # ---- stage 1: ln_1 + QKV projection (row-tiled, 3 lane-dense outputs) ----
    row_spec = pl.BlockSpec((1, tr, C), lambda b, i: (b, i, 0))
    q, k, v = pl.pallas_call(
        _ln_qkv_kernel,
        out_shape=(jax.ShapeDtypeStruct((B, T, C), jnp.bfloat16),) * 3,
        grid=(B, T // tr),
        in_specs=[
            row_spec,
            wspec(params["ln1_g"]), wspec(params["ln1_b"]),
            wspec(w_q), wspec(w_k), wspec(w_v),
            wspec(b_q), wspec(b_k), wspec(b_v),
        ],
        out_specs=(row_spec, row_spec, row_spec),
        compiler_params=cparams_rows,
    )(x_bf16, params["ln1_g"], params["ln1_b"], w_q, w_k, w_v, b_q, b_k, b_v)

    # ---- stage 2: causal flash attention (q-tiled, online softmax over kv) ---
    # K/V index_maps are clamped to the causal diagonal: above-diagonal tiles
    # repeat the previous block index, so Pallas skips their DMA entirely.
    def kv_map(b, qi, kj):
        last_kj = (qi * tq + tq - 1) // tk
        return (b, jnp.minimum(kj, last_kj), 0)

    y = pl.pallas_call(
        functools.partial(_flash_attn_kernel, n_head=H),
        out_shape=jax.ShapeDtypeStruct((B, T, C), jnp.bfloat16),
        grid=(B, T // tq, T // tk),
        in_specs=[
            pl.BlockSpec((1, tq, C), lambda b, qi, kj: (b, qi, 0)),
            pl.BlockSpec((1, tk, C), kv_map),
            pl.BlockSpec((1, tk, C), kv_map),
        ],
        out_specs=pl.BlockSpec((1, tq, C), lambda b, qi, kj: (b, qi, 0)),
        scratch_shapes=[
            pltpu.VMEM((H, tq, LANES), jnp.float32),   # running max  m (lane-dense)
            pltpu.VMEM((H, tq, LANES), jnp.float32),   # running sum  l (lane-dense)
            pltpu.VMEM((H, tq, D), jnp.float32),       # output accumulator
        ],
        compiler_params=pltpu.CompilerParams(
            dimension_semantics=("parallel", "parallel", "arbitrary"),
            vmem_limit_bytes=vmem_limit),
    )(q, k, v)

    # ---- stage 3: attention out-proj + ln_2 + MLP (row-tiled) ----------------
    out = pl.pallas_call(
        _proj_mlp_kernel,
        out_shape=jax.ShapeDtypeStruct((B, T, C), x.dtype),
        grid=(B, T // tr),
        in_specs=[
            row_spec,
            wspec(w_proj), wspec(params["b_proj"]),
            wspec(params["ln2_g"]), wspec(params["ln2_b"]),
            wspec(w_fc), wspec(params["b_fc"]),
            wspec(w_p2), wspec(params["b_proj2"]),
        ],
        out_specs=row_spec,
        compiler_params=cparams_rows,
    )(y, w_proj, params["b_proj"], params["ln2_g"], params["ln2_b"],
      w_fc, params["b_fc"], w_p2, params["b_proj2"])
    return out


# ---------------------------- pure-JAX reference ------------------------------

def block_reference(x, params, n_head):
    def ln(x, g, b, eps=1e-5):
        mu = jnp.mean(x, axis=-1, keepdims=True)
        var = jnp.mean((x - mu) ** 2, axis=-1, keepdims=True)
        return (x - mu) / jnp.sqrt(var + eps) * g[0] + b[0]

    B, T, C = x.shape
    hd = C // n_head
    h = ln(x, params["ln1_g"], params["ln1_b"])
    qkv = h @ params["w_qkv"] + params["b_qkv"][0]
    q, k, v = jnp.split(qkv, 3, axis=-1)
    q = q.reshape(B, T, n_head, hd).transpose(0, 2, 1, 3)
    k = k.reshape(B, T, n_head, hd).transpose(0, 2, 1, 3)
    v = v.reshape(B, T, n_head, hd).transpose(0, 2, 1, 3)
    s = jnp.einsum("bhqd,bhkd->bhqk", q, k) / math.sqrt(hd)
    mask = jnp.tril(jnp.ones((T, T), dtype=bool))
    s = jnp.where(mask, s, -jnp.inf)
    p = jax.nn.softmax(s, axis=-1)
    y = jnp.einsum("bhqk,bhkd->bhqd", p, v).transpose(0, 2, 1, 3).reshape(B, T, C)
    attn_out = y @ params["w_proj"] + params["b_proj"][0]
    h2 = ln(attn_out, params["ln2_g"], params["ln2_b"])
    f = h2 @ params["w_fc"] + params["b_fc"][0]
    c = math.sqrt(2.0 / math.pi)
    f = 0.5 * f * (1.0 + jnp.tanh(c * (f + 0.044715 * f ** 3)))
    return f @ params["w_proj2"] + params["b_proj2"][0]


# ----------------------------------- main -------------------------------------

if __name__ == "__main__":
    # Small config: T=16 with tile=8 exercises every flash path (init / masked
    # diagonal tile / unmasked below-diagonal tile / skipped+clamped tile /
    # finalize) and the row tiling of stages 1 and 3.
    B, T, C, n_head = 2, 16, 32, 4         # head_dim = 8

    key = jax.random.PRNGKey(0)
    ks = jax.random.split(key, 13)

    def nrm(k, shape, std=0.02):
        return (std * jax.random.normal(k, shape)).astype(jnp.float32)

    # Weights stored pre-transposed so kernels compute x @ W (+ b), matching
    # torch.nn.Linear's  y = x @ W.T + b  semantics.
    params = {
        "ln1_g": (1.0 + 0.1 * jax.random.normal(ks[8], (1, C))).astype(jnp.float32),
        "ln1_b": nrm(ks[9], (1, C)),
        "w_qkv": nrm(ks[0], (C, 3 * C)),
        "b_qkv": nrm(ks[1], (1, 3 * C)),
        "w_proj": nrm(ks[2], (C, C)),
        "b_proj": nrm(ks[3], (1, C)),
        "ln2_g": (1.0 + 0.1 * jax.random.normal(ks[10], (1, C))).astype(jnp.float32),
        "ln2_b": nrm(ks[11], (1, C)),
        "w_fc": nrm(ks[4], (C, 4 * C)),
        "b_fc": nrm(ks[5], (1, 4 * C)),
        "w_proj2": nrm(ks[6], (4 * C, C)),
        "b_proj2": nrm(ks[7], (1, C)),
    }

    x = jax.random.normal(ks[12], (B, T, C), dtype=jnp.float32)

    ref = block_reference(x, params, n_head)

    def run(buffered):
        o = gpt2_block(x, params, n_head,
                       row_tile=8, q_tile=8, kv_tile=8,
                       buffered_weights=buffered)
        return jax.block_until_ready(o)

    # bf16 matmul operands / activations -> compare against the f32 reference
    # with a loose tolerance.
    ATOL = RTOL = 2e-2
    try:
        out = run(True)
        ok = bool(jnp.allclose(out, ref, atol=ATOL, rtol=RTOL))
    except Exception:
        ok = False
    if not ok:
        # Fallback without pl.Buffered(1) weight specs in case this JAX build
        # does not support pipeline_mode on BlockSpec.
        out = run(False)
        ok = bool(jnp.allclose(out, ref, atol=ATOL, rtol=RTOL))

    assert out.shape == (B, T, C)
    assert ok, f"max abs err {jnp.max(jnp.abs(out - ref))}"
    print("KERNEL_OK")
</pallas_src>

<mosaic_0001>
module attributes {stable_mosaic.version = 11 : i64} {
  func.func @_ln_qkv_kernel(%arg0: i32, %arg1: i32, %arg2: memref<1x8x32xbf16, #tpu.memory_space<vmem>>, %arg3: memref<1x32xf32, #tpu.memory_space<vmem>>, %arg4: memref<1x32xf32, #tpu.memory_space<vmem>>, %arg5: memref<32x32xbf16, #tpu.memory_space<vmem>>, %arg6: memref<32x32xbf16, #tpu.memory_space<vmem>>, %arg7: memref<32x32xbf16, #tpu.memory_space<vmem>>, %arg8: memref<1x32xf32, #tpu.memory_space<vmem>>, %arg9: memref<1x32xf32, #tpu.memory_space<vmem>>, %arg10: memref<1x32xf32, #tpu.memory_space<vmem>>, %arg11: memref<1x8x32xbf16, #tpu.memory_space<vmem>>, %arg12: memref<1x8x32xbf16, #tpu.memory_space<vmem>>, %arg13: memref<1x8x32xbf16, #tpu.memory_space<vmem>>) attributes {dimension_semantics = [#tpu.dimension_semantics<parallel>, #tpu.dimension_semantics<parallel>], iteration_bounds = array<i64: 2, 2>, scalar_prefetch = 0 : i64, scratch_operands = 0 : i64, tpu.core_type = #tpu.core_type<tc>, window_params = [{transform_indices = @transform_0, window_bounds = array<i64: 1, 8, 32>}, {pipeline_mode = #tpu.pipeline_mode<synchronous>, transform_indices = @transform_1, window_bounds = array<i64: 1, 32>}, {pipeline_mode = #tpu.pipeline_mode<synchronous>, transform_indices = @transform_2, window_bounds = array<i64: 1, 32>}, {pipeline_mode = #tpu.pipeline_mode<synchronous>, transform_indices = @transform_3, window_bounds = array<i64: 32, 32>}, {pipeline_mode = #tpu.pipeline_mode<synchronous>, transform_indices = @transform_4, window_bounds = array<i64: 32, 32>}, {pipeline_mode = #tpu.pipeline_mode<synchronous>, transform_indices = @transform_5, window_bounds = array<i64: 32, 32>}, {pipeline_mode = #tpu.pipeline_mode<synchronous>, transform_indices = @transform_6, window_bounds = array<i64: 1, 32>}, {pipeline_mode = #tpu.pipeline_mode<synchronous>, transform_indices = @transform_7, window_bounds = array<i64: 1, 32>}, {pipeline_mode = #tpu.pipeline_mode<synchronous>, transform_indices = @transform_8, window_bounds = array<i64: 1, 32>}, {transform_indices = @transform_9, window_bounds = array<i64: 1, 8, 32>}, {transform_indices = @transform_10, window_bounds = array<i64: 1, 8, 32>}, {transform_indices = @transform_11, window_bounds = array<i64: 1, 8, 32>}]} {
    %c0 = arith.constant 0 : index
    %c0_0 = arith.constant 0 : index
    %c0_1 = arith.constant 0 : index
    %0 = vector.load %arg2[%c0, %c0_0, %c0_1] : memref<1x8x32xbf16, #tpu.memory_space<vmem>>, vector<1x8x32xbf16>
    %1 = vector.shape_cast %0 : vector<1x8x32xbf16> to vector<8x32xbf16>
    %2 = arith.extf %1 : vector<8x32xbf16> to vector<8x32xf32>
    %c0_2 = arith.constant 0 : index
    %c0_3 = arith.constant 0 : index
    %3 = vector.load %arg3[%c0_2, %c0_3] : memref<1x32xf32, #tpu.memory_space<vmem>>, vector<1x32xf32>
    %4 = vector.shape_cast %3 : vector<1x32xf32> to vector<32xf32>
    %c0_4 = arith.constant 0 : index
    %c0_5 = arith.constant 0 : index
    %5 = vector.load %arg4[%c0_4, %c0_5] : memref<1x32xf32, #tpu.memory_space<vmem>>, vector<1x32xf32>
    %6 = vector.shape_cast %5 : vector<1x32xf32> to vector<32xf32>
    %cst = arith.constant dense<0.000000e+00> : vector<8xf32>
    %7 = vector.multi_reduction <add>, %2, %cst [1] : vector<8x32xf32> to vector<8xf32>
    %8 = vector.shape_cast %7 : vector<8xf32> to vector<8x1xf32>
    %cst_6 = arith.constant 3.200000e+01 : f32
    %9 = vector.broadcast %cst_6 : f32 to vector<8x1xf32>
    %10 = arith.divf %8, %9 : vector<8x1xf32>
    %11 = vector.broadcast %10 : vector<8x1xf32> to vector<8x32xf32>
    %12 = arith.subf %2, %11 : vector<8x32xf32>
    %13 = arith.mulf %12, %12 : vector<8x32xf32>
    %cst_7 = arith.constant dense<0.000000e+00> : vector<8xf32>
    %14 = vector.multi_reduction <add>, %13, %cst_7 [1] : vector<8x32xf32> to vector<8xf32>
    %15 = vector.shape_cast %14 : vector<8xf32> to vector<8x1xf32>
    %cst_8 = arith.constant 3.200000e+01 : f32
    %16 = vector.broadcast %cst_8 : f32 to vector<8x1xf32>
    %17 = arith.divf %15, %16 : vector<8x1xf32>
    %cst_9 = arith.constant 9.99999974E-6 : f32
    %18 = vector.broadcast %cst_9 : f32 to vector<8x1xf32>
    %19 = arith.addf %17, %18 : vector<8x1xf32>
    %20 = math.rsqrt %19 : vector<8x1xf32>
    %21 = vector.broadcast %20 : vector<8x1xf32> to vector<8x32xf32>
    %22 = arith.mulf %12, %21 : vector<8x32xf32>
    %23 = vector.shape_cast %4 : vector<32xf32> to vector<1x32xf32>
    %24 = vector.broadcast %23 : vector<1x32xf32> to vector<8x32xf32>
    %25 = arith.mulf %22, %24 : vector<8x32xf32>
    %26 = vector.shape_cast %6 : vector<32xf32> to vector<1x32xf32>
    %27 = vector.broadcast %26 : vector<1x32xf32> to vector<8x32xf32>
    %28 = arith.addf %25, %27 : vector<8x32xf32>
    %29 = arith.truncf %28 : vector<8x32xf32> to vector<8x32xbf16>
    %c0_10 = arith.constant 0 : index
    %c0_11 = arith.constant 0 : index
    %30 = vector.load %arg5[%c0_10, %c0_11] : memref<32x32xbf16, #tpu.memory_space<vmem>>, vector<32x32xbf16>
    %cst_12 = arith.constant dense<0.000000e+00> : vector<8x32xf32>
    %31 = tpu.matmul %29, %30, %cst_12 {dimension_numbers = #tpu.dot_dimension_numbers<[1], [0], [0], [1], [0, 0, 1, 1], [], []>} : vector<8x32xbf16>, vector<32x32xbf16>, vector<8x32xf32> -> vector<8x32xf32>
    %c0_13 = arith.constant 0 : index
    %c0_14 = arith.constant 0 : index
    %32 = vector.load %arg8[%c0_13, %c0_14] : memref<1x32xf32, #tpu.memory_space<vmem>>, vector<1x32xf32>
    %33 = vector.shape_cast %32 : vector<1x32xf32> to vector<32xf32>
    %34 = vector.shape_cast %33 : vector<32xf32> to vector<1x32xf32>
    %35 = vector.broadcast %34 : vector<1x32xf32> to vector<8x32xf32>
    %36 = arith.addf %31, %35 : vector<8x32xf32>
    %37 = arith.truncf %36 : vector<8x32xf32> to vector<8x32xbf16>
    %c0_15 = arith.constant 0 : index
    %c0_16 = arith.constant 0 : index
    %c0_17 = arith.constant 0 : index
    %38 = vector.load %arg11[%c0_15, %c0_16, %c0_17] : memref<1x8x32xbf16, #tpu.memory_space<vmem>>, vector<1x8x32xbf16>
    %39 = vector.shape_cast %38 : vector<1x8x32xbf16> to vector<8x32xbf16>
    %40 = vector.shape_cast %37 : vector<8x32xbf16> to vector<1x8x32xbf16>
    tpu.vector_store %arg11[%c0_15, %c0_16, %c0_17], %40 {strides = array<i32>} : memref<1x8x32xbf16, #tpu.memory_space<vmem>>, vector<1x8x32xbf16>,
    %c0_18 = arith.constant 0 : index
    %c0_19 = arith.constant 0 : index
    %41 = vector.load %arg6[%c0_18, %c0_19] : memref<32x32xbf16, #tpu.memory_space<vmem>>, vector<32x32xbf16>
    %cst_20 = arith.constant dense<0.000000e+00> : vector<8x32xf32>
    %42 = tpu.matmul %29, %41, %cst_20 {dimension_numbers = #tpu.dot_dimension_numbers<[1], [0], [0], [1], [0, 0, 1, 1], [], []>} : vector<8x32xbf16>, vector<32x32xbf16>, vector<8x32xf32> -> vector<8x32xf32>
    %c0_21 = arith.constant 0 : index
    %c0_22 = arith.constant 0 : index
    %43 = vector.load %arg9[%c0_21, %c0_22] : memref<1x32xf32, #tpu.memory_space<vmem>>, vector<1x32xf32>
    %44 = vector.shape_cast %43 : vector<1x32xf32> to vector<32xf32>
    %45 = vector.shape_cast %44 : vector<32xf32> to vector<1x32xf32>
    %46 = vector.broadcast %45 : vector<1x32xf32> to vector<8x32xf32>
    %47 = arith.addf %42, %46 : vector<8x32xf32>
    %48 = arith.truncf %47 : vector<8x32xf32> to vector<8x32xbf16>
    %c0_23 = arith.constant 0 : index
    %c0_24 = arith.constant 0 : index
    %c0_25 = arith.constant 0 : index
    %49 = vector.load %arg12[%c0_23, %c0_24, %c0_25] : memref<1x8x32xbf16, #tpu.memory_space<vmem>>, vector<1x8x32xbf16>
    %50 = vector.shape_cast %49 : vector<1x8x32xbf16> to vector<8x32xbf16>
    %51 = vector.shape_cast %48 : vector<8x32xbf16> to vector<1x8x32xbf16>
    tpu.vector_store %arg12[%c0_23, %c0_24, %c0_25], %51 {strides = array<i32>} : memref<1x8x32xbf16, #tpu.memory_space<vmem>>, vector<1x8x32xbf16>,
    %c0_26 = arith.constant 0 : index
    %c0_27 = arith.constant 0 : index
    %52 = vector.load %arg7[%c0_26, %c0_27] : memref<32x32xbf16, #tpu.memory_space<vmem>>, vector<32x32xbf16>
    %cst_28 = arith.constant dense<0.000000e+00> : vector<8x32xf32>
    %53 = tpu.matmul %29, %52, %cst_28 {dimension_numbers = #tpu.dot_dimension_numbers<[1], [0], [0], [1], [0, 0, 1, 1], [], []>} : vector<8x32xbf16>, vector<32x32xbf16>, vector<8x32xf32> -> vector<8x32xf32>
    %c0_29 = arith.constant 0 : index
    %c0_30 = arith.constant 0 : index
    %54 = vector.load %arg10[%c0_29, %c0_30] : memref<1x32xf32, #tpu.memory_space<vmem>>, vector<1x32xf32>
    %55 = vector.shape_cast %54 : vector<1x32xf32> to vector<32xf32>
    %56 = vector.shape_cast %55 : vector<32xf32> to vector<1x32xf32>
    %57 = vector.broadcast %56 : vector<1x32xf32> to vector<8x32xf32>
    %58 = arith.addf %53, %57 : vector<8x32xf32>
    %59 = arith.truncf %58 : vector<8x32xf32> to vector<8x32xbf16>
    %c0_31 = arith.constant 0 : index
    %c0_32 = arith.constant 0 : index
    %c0_33 = arith.constant 0 : index
    %60 = vector.load %arg13[%c0_31, %c0_32, %c0_33] : memref<1x8x32xbf16, #tpu.memory_space<vmem>>, vector<1x8x32xbf16>
    %61 = vector.shape_cast %60 : vector<1x8x32xbf16> to vector<8x32xbf16>
    %62 = vector.shape_cast %59 : vector<8x32xbf16> to vector<1x8x32xbf16>
    tpu.vector_store %arg13[%c0_31, %c0_32, %c0_33], %62 {strides = array<i32>} : memref<1x8x32xbf16, #tpu.memory_space<vmem>>, vector<1x8x32xbf16>,
    return
  }
  func.func @transform_0(%arg0: i32, %arg1: i32) -> (i32, i32, i32) {
    %c0_i32 = arith.constant 0 : i32
    %c0_i32_0 = arith.constant 0 : i32
    return %arg0, %arg1, %c0_i32 : i32, i32, i32
  }
  func.func @transform_1(%arg0: i32, %arg1: i32) -> (i32, i32) {
    %c0_i32 = arith.constant 0 : i32
    %c0_i32_0 = arith.constant 0 : i32
    %c0_i32_1 = arith.constant 0 : i32
    return %c0_i32, %c0_i32_0 : i32, i32
  }
  func.func @transform_2(%arg0: i32, %arg1: i32) -> (i32, i32) {
    %c0_i32 = arith.constant 0 : i32
    %c0_i32_0 = arith.constant 0 : i32
    %c0_i32_1 = arith.constant 0 : i32
    return %c0_i32, %c0_i32_0 : i32, i32
  }
  func.func @transform_3(%arg0: i32, %arg1: i32) -> (i32, i32) {
    %c0_i32 = arith.constant 0 : i32
    %c0_i32_0 = arith.constant 0 : i32
    %c0_i32_1 = arith.constant 0 : i32
    return %c0_i32, %c0_i32_0 : i32, i32
  }
  func.func @transform_4(%arg0: i32, %arg1: i32) -> (i32, i32) {
    %c0_i32 = arith.constant 0 : i32
    %c0_i32_0 = arith.constant 0 : i32
    %c0_i32_1 = arith.constant 0 : i32
    return %c0_i32, %c0_i32_0 : i32, i32
  }
  func.func @transform_5(%arg0: i32, %arg1: i32) -> (i32, i32) {
    %c0_i32 = arith.constant 0 : i32
    %c0_i32_0 = arith.constant 0 : i32
    %c0_i32_1 = arith.constant 0 : i32
    return %c0_i32, %c0_i32_0 : i32, i32
  }
  func.func @transform_6(%arg0: i32, %arg1: i32) -> (i32, i32) {
    %c0_i32 = arith.constant 0 : i32
    %c0_i32_0 = arith.constant 0 : i32
    %c0_i32_1 = arith.constant 0 : i32
    return %c0_i32, %c0_i32_0 : i32, i32
  }
  func.func @transform_7(%arg0: i32, %arg1: i32) -> (i32, i32) {
    %c0_i32 = arith.constant 0 : i32
    %c0_i32_0 = arith.constant 0 : i32
    %c0_i32_1 = arith.constant 0 : i32
    return %c0_i32, %c0_i32_0 : i32, i32
  }
  func.func @transform_8(%arg0: i32, %arg1: i32) -> (i32, i32) {
    %c0_i32 = arith.constant 0 : i32
    %c0_i32_0 = arith.constant 0 : i32
    %c0_i32_1 = arith.constant 0 : i32
    return %c0_i32, %c0_i32_0 : i32, i32
  }
  func.func @transform_9(%arg0: i32, %arg1: i32) -> (i32, i32, i32) {
    %c0_i32 = arith.constant 0 : i32
    %c0_i32_0 = arith.constant 0 : i32
    return %arg0, %arg1, %c0_i32 : i32, i32, i32
  }
  func.func @transform_10(%arg0: i32, %arg1: i32) -> (i32, i32, i32) {
    %c0_i32 = arith.constant 0 : i32
    %c0_i32_0 = arith.constant 0 : i32
    return %arg0, %arg1, %c0_i32 : i32, i32, i32
  }
  func.func @transform_11(%arg0: i32, %arg1: i32) -> (i32, i32, i32) {
    %c0_i32 = arith.constant 0 : i32
    %c0_i32_0 = arith.constant 0 : i32
    return %arg0, %arg1, %c0_i32 : i32, i32, i32
  }
}

module attributes {stable_mosaic.version = 11 : i64} {
  func.func @_ln_qkv_kernel(%arg0: i32, %arg1: i32, %arg2: memref<1x8x32xbf16, #tpu.memory_space<vmem>>, %arg3: memref<1x32xf32, #tpu.memory_space<vmem>>, %arg4: memref<1x32xf32, #tpu.memory_space<vmem>>, %arg5: memref<32x32xbf16, #tpu.memory_space<vmem>>, %arg6: memref<32x32xbf16, #tpu.memory_space<vmem>>, %arg7: memref<32x32xbf16, #tpu.memory_space<vmem>>, %arg8: memref<1x32xf32, #tpu.memory_space<vmem>>, %arg9: memref<1x32xf32, #tpu.memory_space<vmem>>, %arg10: memref<1x32xf32, #tpu.memory_space<vmem>>, %arg11: memref<1x8x32xbf16, #tpu.memory_space<vmem>>, %arg12: memref<1x8x32xbf16, #tpu.memory_space<vmem>>, %arg13: memref<1x8x32xbf16, #tpu.memory_space<vmem>>) attributes {dimension_semantics = [#tpu.dimension_semantics<parallel>, #tpu.dimension_semantics<parallel>], iteration_bounds = array<i64: 2, 2>, scalar_prefetch = 0 : i64, scratch_operands = 0 : i64, tpu.core_type = #tpu.core_type<tc>, window_params = [{transform_indices = @transform_0, window_bounds = array<i64: 1, 8, 32>}, {pipeline_mode = #tpu.pipeline_mode<synchronous>, transform_indices = @transform_1, window_bounds = array<i64: 1, 32>}, {pipeline_mode = #tpu.pipeline_mode<synchronous>, transform_indices = @transform_2, window_bounds = array<i64: 1, 32>}, {pipeline_mode = #tpu.pipeline_mode<synchronous>, transform_indices = @transform_3, window_bounds = array<i64: 32, 32>}, {pipeline_mode = #tpu.pipeline_mode<synchronous>, transform_indices = @transform_4, window_bounds = array<i64: 32, 32>}, {pipeline_mode = #tpu.pipeline_mode<synchronous>, transform_indices = @transform_5, window_bounds = array<i64: 32, 32>}, {pipeline_mode = #tpu.pipeline_mode<synchronous>, transform_indices = @transform_6, window_bounds = array<i64: 1, 32>}, {pipeline_mode = #tpu.pipeline_mode<synchronous>, transform_indices = @transform_7, window_bounds = array<i64: 1, 32>}, {pipeline_mode = #tpu.pipeline_mode<synchronous>, transform_indices = @transform_8, window_bounds = array<i64: 1, 32>}, {transform_indices = @transform_9, window_bounds = array<i64: 1, 8, 32>}, {transform_indices = @transform_10, window_bounds = array<i64: 1, 8, 32>}, {transform_indices = @transform_11, window_bounds = array<i64: 1, 8, 32>}]} {
    %c0 = arith.constant 0 : index
    %c0_0 = arith.constant 0 : index
    %c0_1 = arith.constant 0 : index
    %0 = vector.load %arg2[%c0, %c0_0, %c0_1] : memref<1x8x32xbf16, #tpu.memory_space<vmem>>, vector<1x8x32xbf16>
    %1 = vector.shape_cast %0 : vector<1x8x32xbf16> to vector<8x32xbf16>
    %2 = arith.extf %1 : vector<8x32xbf16> to vector<8x32xf32>
    %c0_2 = arith.constant 0 : index
    %c0_3 = arith.constant 0 : index
    %3 = vector.load %arg3[%c0_2, %c0_3] : memref<1x32xf32, #tpu.memory_space<vmem>>, vector<1x32xf32>
    %4 = vector.shape_cast %3 : vector<1x32xf32> to vector<32xf32>
    %c0_4 = arith.constant 0 : index
    %c0_5 = arith.constant 0 : index
    %5 = vector.load %arg4[%c0_4, %c0_5] : memref<1x32xf32, #tpu.memory_space<vmem>>, vector<1x32xf32>
    %6 = vector.shape_cast %5 : vector<1x32xf32> to vector<32xf32>
    %cst = arith.constant dense<0.000000e+00> : vector<8xf32>
    %7 = vector.multi_reduction <add>, %2, %cst [1] : vector<8x32xf32> to vector<8xf32>
    %8 = vector.shape_cast %7 : vector<8xf32> to vector<8x1xf32>
    %cst_6 = arith.constant 3.200000e+01 : f32
    %9 = vector.broadcast %cst_6 : f32 to vector<8x1xf32>
    %10 = arith.divf %8, %9 : vector<8x1xf32>
    %11 = vector.broadcast %10 : vector<8x1xf32> to vector<8x32xf32>
    %12 = arith.subf %2, %11 : vector<8x32xf32>
    %13 = arith.mulf %12, %12 : vector<8x32xf32>
    %cst_7 = arith.constant dense<0.000000e+00> : vector<8xf32>
    %14 = vector.multi_reduction <add>, %13, %cst_7 [1] : vector<8x32xf32> to vector<8xf32>
    %15 = vector.shape_cast %14 : vector<8xf32> to vector<8x1xf32>
    %cst_8 = arith.constant 3.200000e+01 : f32
    %16 = vector.broadcast %cst_8 : f32 to vector<8x1xf32>
    %17 = arith.divf %15, %16 : vector<8x1xf32>
    %cst_9 = arith.constant 9.99999974E-6 : f32
    %18 = vector.broadcast %cst_9 : f32 to vector<8x1xf32>
    %19 = arith.addf %17, %18 : vector<8x1xf32>
    %20 = math.rsqrt %19 : vector<8x1xf32>
    %21 = vector.broadcast %20 : vector<8x1xf32> to vector<8x32xf32>
    %22 = arith.mulf %12, %21 : vector<8x32xf32>
    %23 = vector.shape_cast %4 : vector<32xf32> to vector<1x32xf32>
    %24 = vector.broadcast %23 : vector<1x32xf32> to vector<8x32xf32>
    %25 = arith.mulf %22, %24 : vector<8x32xf32>
    %26 = vector.shape_cast %6 : vector<32xf32> to vector<1x32xf32>
    %27 = vector.broadcast %26 : vector<1x32xf32> to vector<8x32xf32>
    %28 = arith.addf %25, %27 : vector<8x32xf32>
    %29 = arith.truncf %28 : vector<8x32xf32> to vector<8x32xbf16>
    %c0_10 = arith.constant 0 : index
    %c0_11 = arith.constant 0 : index
    %30 = vector.load %arg5[%c0_10, %c0_11] : memref<32x32xbf16, #tpu.memory_space<vmem>>, vector<32x32xbf16>
    %cst_12 = arith.constant dense<0.000000e+00> : vector<8x32xf32>
    %31 = tpu.matmul %29, %30, %cst_12 {dimension_numbers = #tpu.dot_dimension_numbers<[1], [0], [0], [1], [0, 0, 1, 1], [], []>} : vector<8x32xbf16>, vector<32x32xbf16>, vector<8x32xf32> -> vector<8x32xf32>
    %c0_13 = arith.constant 0 : index
    %c0_14 = arith.constant 0 : index
    %32 = vector.load %arg8[%c0_13, %c0_14] : memref<1x32xf32, #tpu.memory_space<vmem>>, vector<1x32xf32>
    %33 = vector.shape_cast %32 : vector<1x32xf32> to vector<32xf32>
    %34 = vector.shape_cast %33 : vector<32xf32> to vector<1x32xf32>
    %35 = vector.broadcast %34 : vector<1x32xf32> to vector<8x32xf32>
    %36 = arith.addf %31, %35 : vector<8x32xf32>
    %37 = arith.truncf %36 : vector<8x32xf32> to vector<8x32xbf16>
    %c0_15 = arith.constant 0 : index
    %c0_16 = arith.constant 0 : index
    %c0_17 = arith.constant 0 : index
    %38 = vector.load %arg11[%c0_15, %c0_16, %c0_17] : memref<1x8x32xbf16, #tpu.memory_space<vmem>>, vector<1x8x32xbf16>
    %39 = vector.shape_cast %38 : vector<1x8x32xbf16> to vector<8x32xbf16>
    %40 = vector.shape_cast %37 : vector<8x32xbf16> to vector<1x8x32xbf16>
    tpu.vector_store %arg11[%c0_15, %c0_16, %c0_17], %40 {strides = array<i32>} : memref<1x8x32xbf16, #tpu.memory_space<vmem>>, vector<1x8x32xbf16>,
    %c0_18 = arith.constant 0 : index
    %c0_19 = arith.constant 0 : index
    %41 = vector.load %arg6[%c0_18, %c0_19] : memref<32x32xbf16, #tpu.memory_space<vmem>>, vector<32x32xbf16>
    %cst_20 = arith.constant dense<0.000000e+00> : vector<8x32xf32>
    %42 = tpu.matmul %29, %41, %cst_20 {dimension_numbers = #tpu.dot_dimension_numbers<[1], [0], [0], [1], [0, 0, 1, 1], [], []>} : vector<8x32xbf16>, vector<32x32xbf16>, vector<8x32xf32> -> vector<8x32xf32>
    %c0_21 = arith.constant 0 : index
    %c0_22 = arith.constant 0 : index
    %43 = vector.load %arg9[%c0_21, %c0_22] : memref<1x32xf32, #tpu.memory_space<vmem>>, vector<1x32xf32>
    %44 = vector.shape_cast %43 : vector<1x32xf32> to vector<32xf32>
    %45 = vector.shape_cast %44 : vector<32xf32> to vector<1x32xf32>
    %46 = vector.broadcast %45 : vector<1x32xf32> to vector<8x32xf32>
    %47 = arith.addf %42, %46 : vector<8x32xf32>
    %48 = arith.truncf %47 : vector<8x32xf32> to vector<8x32xbf16>
    %c0_23 = arith.constant 0 : index
    %c0_24 = arith.constant 0 : index
    %c0_25 = arith.constant 0 : index
    %49 = vector.load %arg12[%c0_23, %c0_24, %c0_25] : memref<1x8x32xbf16, #tpu.memory_space<vmem>>, vector<1x8x32xbf16>
    %50 = vector.shape_cast %49 : vector<1x8x32xbf16> to vector<8x32xbf16>
    %51 = vector.shape_cast %48 : vector<8x32xbf16> to vector<1x8x32xbf16>
    tpu.vector_store %arg12[%c0_23, %c0_24, %c0_25], %51 {strides = array<i32>} : memref<1x8x32xbf16, #tpu.memory_space<vmem>>, vector<1x8x32xbf16>,
    %c0_26 = arith.constant 0 : index
    %c0_27 = arith.constant 0 : index
    %52 = vector.load %arg7[%c0_26, %c0_27] : memref<32x32xbf16, #tpu.memory_space<vmem>>, vector<32x32xbf16>
    %cst_28 = arith.constant dense<0.000000e+00> : vector<8x32xf32>
    %53 = tpu.matmul %29, %52, %cst_28 {dimension_numbers = #tpu.dot_dimension_numbers<[1], [0], [0], [1], [0, 0, 1, 1], [], []>} : vector<8x32xbf16>, vector<32x32xbf16>, vector<8x32xf32> -> vector<8x32xf32>
    %c0_29 = arith.constant 0 : index
    %c0_30 = arith.constant 0 : index
    %54 = vector.load %arg10[%c0_29, %c0_30] : memref<1x32xf32, #tpu.memory_space<vmem>>, vector<1x32xf32>
    %55 = vector.shape_cast %54 : vector<1x32xf32> to vector<32xf32>
    %56 = vector.shape_cast %55 : vector<32xf32> to vector<1x32xf32>
    %57 = vector.broadcast %56 : vector<1x32xf32> to vector<8x32xf32>
    %58 = arith.addf %53, %57 : vector<8x32xf32>
    %59 = arith.truncf %58 : vector<8x32xf32> to vector<8x32xbf16>
    %c0_31 = arith.constant 0 : index
    %c0_32 = arith.constant 0 : index
    %c0_33 = arith.constant 0 : index
    %60 = vector.load %arg13[%c0_31, %c0_32, %c0_33] : memref<1x8x32xbf16, #tpu.memory_space<vmem>>, vector<1x8x32xbf16>
    %61 = vector.shape_cast %60 : vector<1x8x32xbf16> to vector<8x32xbf16>
    %62 = vector.shape_cast %59 : vector<8x32xbf16> to vector<1x8x32xbf16>
    tpu.vector_store %arg13[%c0_31, %c0_32, %c0_33], %62 {strides = array<i32>} : memref<1x8x32xbf16, #tpu.memory_space<vmem>>, vector<1x8x32xbf16>,
    return
  }
  func.func @transform_0(%arg0: i32, %arg1: i32) -> (i32, i32, i32) {
    %c0_i32 = arith.constant 0 : i32
    %c0_i32_0 = arith.constant 0 : i32
    return %arg0, %arg1, %c0_i32 : i32, i32, i32
  }
  func.func @transform_1(%arg0: i32, %arg1: i32) -> (i32, i32) {
    %c0_i32 = arith.constant 0 : i32
    %c0_i32_0 = arith.constant 0 : i32
    %c0_i32_1 = arith.constant 0 : i32
    return %c0_i32, %c0_i32_0 : i32, i32
  }
  func.func @transform_2(%arg0: i32, %arg1: i32) -> (i32, i32) {
    %c0_i32 = arith.constant 0 : i32
    %c0_i32_0 = arith.constant 0 : i32
    %c0_i32_1 = arith.constant 0 : i32
    return %c0_i32, %c0_i32_0 : i32, i32
  }
  func.func @transform_3(%arg0: i32, %arg1: i32) -> (i32, i32) {
    %c0_i32 = arith.constant 0 : i32
    %c0_i32_0 = arith.constant 0 : i32
    %c0_i32_1 = arith.constant 0 : i32
    return %c0_i32, %c0_i32_0 : i32, i32
  }
  func.func @transform_4(%arg0: i32, %arg1: i32) -> (i32, i32) {
    %c0_i32 = arith.constant 0 : i32
    %c0_i32_0 = arith.constant 0 : i32
    %c0_i32_1 = arith.constant 0 : i32
    return %c0_i32, %c0_i32_0 : i32, i32
  }
  func.func @transform_5(%arg0: i32, %arg1: i32) -> (i32, i32) {
    %c0_i32 = arith.constant 0 : i32
    %c0_i32_0 = arith.constant 0 : i32
    %c0_i32_1 = arith.constant 0 : i32
    return %c0_i32, %c0_i32_0 : i32, i32
  }
  func.func @transform_6(%arg0: i32, %arg1: i32) -> (i32, i32) {
    %c0_i32 = arith.constant 0 : i32
    %c0_i32_0 = arith.constant 0 : i32
    %c0_i32_1 = arith.constant 0 : i32
    return %c0_i32, %c0_i32_0 : i32, i32
  }
  func.func @transform_7(%arg0: i32, %arg1: i32) -> (i32, i32) {
    %c0_i32 = arith.constant 0 : i32
    %c0_i32_0 = arith.constant 0 : i32
    %c0_i32_1 = arith.constant 0 : i32
    return %c0_i32, %c0_i32_0 : i32, i32
  }
  func.func @transform_8(%arg0: i32, %arg1: i32) -> (i32, i32) {
    %c0_i32 = arith.constant 0 : i32
    %c0_i32_0 = arith.constant 0 : i32
    %c0_i32_1 = arith.constant 0 : i32
    return %c0_i32, %c0_i32_0 : i32, i32
  }
  func.func @transform_9(%arg0: i32, %arg1: i32) -> (i32, i32, i32) {
    %c0_i32 = arith.constant 0 : i32
    %c0_i32_0 = arith.constant 0 : i32
    return %arg0, %arg1, %c0_i32 : i32, i32, i32
  }
  func.func @transform_10(%arg0: i32, %arg1: i32) -> (i32, i32, i32) {
    %c0_i32 = arith.constant 0 : i32
    %c0_i32_0 = arith.constant 0 : i32
    return %arg0, %arg1, %c0_i32 : i32, i32, i32
  }
  func.func @transform_11(%arg0: i32, %arg1: i32) -> (i32, i32, i32) {
    %c0_i32 = arith.constant 0 : i32
    %c0_i32_0 = arith.constant 0 : i32
    return %arg0, %arg1, %c0_i32 : i32, i32, i32
  }
}

</mosaic_0001>

<llo_original>
// kernel: tpu_custom_call.1
$region0: #{tpu_custom_call.1}
  #allocation0 [shape = 'u32[]', space=smem, size = 0x4, offset = 0x4, fixed_abs, tag = 'smem constant byte address 0x4 - core index']
  #allocation1 [shape = 'u32[144,128]{1,0:T(1,128)}', space=vmem, size = 0x12000, scoped, tag = 'internal scratch']
  %s0 = inlined_call_operand.hbm [shape: bf16[2,16,32], index: 0, kind: input, shape index: {}]
  %s1 = inlined_call_operand.vmem [shape: f32[1,32], index: 1, kind: input, shape index: {}]
  %s2 = inlined_call_operand.vmem [shape: f32[1,32], index: 2, kind: input, shape index: {}]
  %s3 = inlined_call_operand.hbm [shape: bf16[32,32], index: 3, kind: input, shape index: {}]
  %s4 = inlined_call_operand.hbm [shape: bf16[32,32], index: 4, kind: input, shape index: {}]
  %s5 = inlined_call_operand.vmem [shape: bf16[32,32], index: 5, kind: input, shape index: {}]
  %s6 = inlined_call_operand.vmem [shape: f32[1,32], index: 6, kind: input, shape index: {}]
  %s7 = inlined_call_operand.vmem [shape: f32[1,32], index: 7, kind: input, shape index: {}]
  %s8 = inlined_call_operand.vmem [shape: f32[1,32], index: 8, kind: input, shape index: {}]
  %s9 = inlined_call_operand.hbm [shape: bf16[2,16,32], index: 9, kind: output, shape index: {0}]
  %s10 = inlined_call_operand.hbm [shape: bf16[2,16,32], index: 10, kind: output, shape index: {1}]
  %s11 = inlined_call_operand.hbm [shape: bf16[2,16,32], index: 11, kind: output, shape index: {2}]
  %12 = xla_tuple %s9, %s10, %s11
  %s13 = sld [smem:[#allocation0]]
  $region97: #{tpu_custom_call.1} parent=0
    _
  %s15 = ssub.s32 1, %s13
  %s16 = scalar_select 0, %s15, %s13
  $region1: #{tpu_custom_call.1} parent=0
    #allocation2 [shape = 'u8[4096]{0}', space=vmem, size = 0x1000, scoped, tag = 'input window, operand 0']
    #allocation3 [shape = 's32[2]{0}', space=sflag, size = 0x8, scoped, tag = 'scoped memory for tpu_custom_call.1']
    #allocation4 [shape = 's32[2]{0}', space=sflag, size = 0x8, scoped, tag = 'scoped memory for tpu_custom_call.1']
    #allocation5 [shape = 'u8[8192]{0}', space=vmem, size = 0x2000, scoped, tag = 'input window, operand 3, single buffered']
    #allocation6 [shape = 's32[1]{0}', space=sflag, size = 0x4, scoped, tag = 'scoped memory for tpu_custom_call.1']
    #allocation7 [shape = 'u8[8192]{0}', space=vmem, size = 0x2000, scoped, tag = 'input window, operand 4, single buffered']
    #allocation8 [shape = 'u8[4096]{0}', space=vmem, size = 0x1000, scoped, tag = 'output window, operand 0']
    #allocation9 [shape = 'u8[4096]{0}', space=vmem, size = 0x1000, scoped, tag = 'output window, operand 1']
    #allocation10 [shape = 's32[2]{0}', space=sflag, size = 0x8, scoped, tag = 'scoped memory for tpu_custom_call.1']
    #allocation11 [shape = 'u8[4096]{0}', space=vmem, size = 0x1000, scoped, tag = 'output window, operand 2']
    %17 = vsyncpa [#allocation3], 0
    %s18 = scalar_lea.sflag [#allocation3], 1
    %19 = vsyncpa %s18, 0
    %20 = vsyncpa [#allocation6], 0
    %21 = vsyncpa [#allocation4], 0
    %s22 = scalar_lea.sflag [#allocation4], 1
    %23 = vsyncpa %s22, 0
    %24 = vsyncpa [#allocation10], 0
    %s25 = scalar_lea.sflag [#allocation10], 1
    %26 = vsyncpa %s25, 0
    loop: start=0, step=1, limit=6
    $region2: #{tpu_custom_call.1} parent=1 // loop_pre_header
      _
    $region3: #{tpu_custom_call.1} parent=1 // loop_header
      %s28 = sphi 0, %s32
      %p29 = scmp.ge.s32.totalorder %s28, 6
      %s35 = sphi 0, %s47
      %s36 = sphi 0, %s43
      %s37 = sphi 0, %s35
      %s38 = sphi 0, %s36
      %s39 = sphi 0, %s37
      %s40 = sphi 0, %s38
      %s52 = sphi 0, %s54
      %s55 = sphi 0, %s52
      %s56 = sphi 0, %s55
      %s72 = sphi 0, %s56
      %s76 = sphi 0, %s76
      %s78 = sphi 0, %s76
      %s79 = sphi 0, %s78
      %s93 = sphi 0, %s79
      %s97 = sphi 0, %s97
      %s99 = sphi 0, %s97
      %s100 = sphi 0, %s99
      %s114 = sphi 0, %s100
      %s118 = sphi 0, %s118
      %s120 = sphi 0, %s118
      %s121 = sphi 0, %s120
      %s135 = sphi 0, %s121
      %s139 = sphi 0, %s139
      %s141 = sphi 0, %s139
      %s142 = sphi 0, %s141
      %s156 = sphi 0, %s142
      %s160 = sphi 0, %s160
      %s162 = sphi 0, %s160
      %s163 = sphi 0, %s162
      %s177 = sphi 0, %s163
      %s181 = sphi 0, %s181
      %s183 = sphi 0, %s181
      %s184 = sphi 0, %s183
      %s198 = sphi 0, %s184
      %s202 = sphi 0, %s202
      %s204 = sphi 0, %s202
      %s205 = sphi 0, %s204
      %s219 = sphi 0, %s205
      %s223 = sphi 0, %s223
      %s225 = sphi 0, %s223
      %s226 = sphi 0, %s225
      %s240 = sphi 0, %s226
      %s248 = sphi 0, %s250
      %s251 = sphi 0, %s248
      %s252 = sphi 0, %s251
      %s268 = sphi 0, %s252
      %s276 = sphi 0, %s278
      %s279 = sphi 0, %s276
      %s280 = sphi 0, %s279
      %s296 = sphi 0, %s280
      %s304 = sphi 0, %s306
      %s307 = sphi 0, %s304
      %s308 = sphi 0, %s307
      %s324 = sphi 0, %s308
    $region4: #{tpu_custom_call.1} parent=1 // loop_header_branch
      %31 = sbr.rel (%p29) target = $region8
    $region5: #{tpu_custom_call.1} parent=1 // loop_body
      %s33 = ssub.s32 %s28, 1
      %s34 = ssub.s32 %s28, 2
      %s41 = sadd.s32 1, %s36
      %p42 = scmp.ge.s32.totalorder %s41, 2
      %s43 = scalar_select %p42, 0, %s41
      %s44 = sadd.s32 1, %s35
      %s45 = scalar_select %p42, %s44, %s35
      %p46 = scmp.ge.s32.totalorder %s45, 2
      %s47 = scalar_select %p46, 0, %s45
      %s48 = ssub.s32 %s35, %s47
      %s49 = ssub.s32 %s36, %s43
      %s50 = sor.u32 %s48, %s49
      %p51 = scmp.eq.s32.totalorder %s50, 0
      %s53 = sadd.s32 %s52, 1
      %s54 = scalar_select %p51, %s52, %s53
      %p57 = pneg %p51
      %p58 = scmp.eq.s32.totalorder %s28, 3
      %p59 = por %p57, %p58
      %p60 = scmp.ne.s32.totalorder %s52, %s55
      %p61 = scmp.eq.s32.totalorder %s28, 0
      %p62 = por %p60, %p61
      %p63 = scmp.ne.s32.totalorder %s52, %s55
      %p64 = scmp.eq.s32.totalorder %s33, 3
      %p65 = por %p63, %p64
      %p66 = scmp.ne.s32.totalorder %s55, %s56
      %p67 = scmp.eq.s32.totalorder %s33, 0
      %p68 = por %p66, %p67
      %p69 = scmp.ne.s32.totalorder %s55, %s56
      %p70 = scmp.eq.s32.totalorder %s34, 3
      %p71 = por %p69, %p70
      %p73 = scmp.ne.s32.totalorder %s56, %s72
      %p74 = scmp.eq.s32.totalorder %s34, 0
      %p75 = por %p73, %p74
      %s77 = sadd.s32 %s76, 1
      %p80 = scmp.eq.s32.totalorder %s28, 3
      %p81 = scmp.ne.s32.totalorder %s76, %s78
      %p82 = scmp.eq.s32.totalorder %s28, 0
      %p83 = por %p81, %p82
      %p84 = scmp.ne.s32.totalorder %s76, %s78
      %p85 = scmp.eq.s32.totalorder %s33, 3
      %p86 = por %p84, %p85
      %p87 = scmp.ne.s32.totalorder %s78, %s79
      %p88 = scmp.eq.s32.totalorder %s33, 0
      %p89 = por %p87, %p88
      %p90 = scmp.ne.s32.totalorder %s78, %s79
      %p91 = scmp.eq.s32.totalorder %s34, 3
      %p92 = por %p90, %p91
      %p94 = scmp.ne.s32.totalorder %s79, %s93
      %p95 = scmp.eq.s32.totalorder %s34, 0
      %p96 = por %p94, %p95
      %s98 = sadd.s32 %s97, 1
      %p101 = scmp.eq.s32.totalorder %s28, 3
      %p102 = scmp.ne.s32.totalorder %s97, %s99
      %p103 = scmp.eq.s32.totalorder %s28, 0
      %p104 = por %p102, %p103
      %p105 = scmp.ne.s32.totalorder %s97, %s99
      %p106 = scmp.eq.s32.totalorder %s33, 3
      %p107 = por %p105, %p106
      %p108 = scmp.ne.s32.totalorder %s99, %s100
      %p109 = scmp.eq.s32.totalorder %s33, 0
      %p110 = por %p108, %p109
      %p111 = scmp.ne.s32.totalorder %s99, %s100
      %p112 = scmp.eq.s32.totalorder %s34, 3
      %p113 = por %p111, %p112
      %p115 = scmp.ne.s32.totalorder %s100, %s114
      %p116 = scmp.eq.s32.totalorder %s34, 0
      %p117 = por %p115, %p116
      %s119 = sadd.s32 %s118, 1
      %p122 = scmp.eq.s32.totalorder %s28, 3
      %p123 = scmp.ne.s32.totalorder %s118, %s120
      %p124 = scmp.eq.s32.totalorder %s28, 0
      %p125 = por %p123, %p124
      %p126 = scmp.ne.s32.totalorder %s118, %s120
      %p127 = scmp.eq.s32.totalorder %s33, 3
      %p128 = por %p126, %p127
      %p129 = scmp.ne.s32.totalorder %s120, %s121
      %p130 = scmp.eq.s32.totalorder %s33, 0
      %p131 = por %p129, %p130
      %p132 = scmp.ne.s32.totalorder %s120, %s121
      %p133 = scmp.eq.s32.totalorder %s34, 3
      %p134 = por %p132, %p133
      %p136 = scmp.ne.s32.totalorder %s121, %s135
      %p137 = scmp.eq.s32.totalorder %s34, 0
      %p138 = por %p136, %p137
      %s140 = sadd.s32 %s139, 1
      %p143 = scmp.eq.s32.totalorder %s28, 3
      %p144 = scmp.ne.s32.totalorder %s139, %s141
      %p145 = scmp.eq.s32.totalorder %s28, 0
      %p146 = por %p144, %p145
      %p147 = scmp.ne.s32.totalorder %s139, %s141
      %p148 = scmp.eq.s32.totalorder %s33, 3
      %p149 = por %p147, %p148
      %p150 = scmp.ne.s32.totalorder %s141, %s142
      %p151 = scmp.eq.s32.totalorder %s33, 0
      %p152 = por %p150, %p151
      %p153 = scmp.ne.s32.totalorder %s141, %s142
      %p154 = scmp.eq.s32.totalorder %s34, 3
      %p155 = por %p153, %p154
      %p157 = scmp.ne.s32.totalorder %s142, %s156
      %p158 = scmp.eq.s32.totalorder %s34, 0
      %p159 = por %p157, %p158
      %s161 = sadd.s32 %s160, 1
      %p164 = scmp.eq.s32.totalorder %s28, 3
      %p165 = scmp.ne.s32.totalorder %s160, %s162
      %p166 = scmp.eq.s32.totalorder %s28, 0
      %p167 = por %p165, %p166
      %p168 = scmp.ne.s32.totalorder %s160, %s162
      %p169 = scmp.eq.s32.totalorder %s33, 3
      %p170 = por %p168, %p169
      %p171 = scmp.ne.s32.totalorder %s162, %s163
      %p172 = scmp.eq.s32.totalorder %s33, 0
      %p173 = por %p171, %p172
      %p174 = scmp.ne.s32.totalorder %s162, %s163
      %p175 = scmp.eq.s32.totalorder %s34, 3
      %p176 = por %p174, %p175
      %p178 = scmp.ne.s32.totalorder %s163, %s177
      %p179 = scmp.eq.s32.totalorder %s34, 0
      %p180 = por %p178, %p179
      %s182 = sadd.s32 %s181, 1
      %p185 = scmp.eq.s32.totalorder %s28, 3
      %p186 = scmp.ne.s32.totalorder %s181, %s183
      %p187 = scmp.eq.s32.totalorder %s28, 0
      %p188 = por %p186, %p187
      %p189 = scmp.ne.s32.totalorder %s181, %s183
      %p190 = scmp.eq.s32.totalorder %s33, 3
      %p191 = por %p189, %p190
      %p192 = scmp.ne.s32.totalorder %s183, %s184
      %p193 = scmp.eq.s32.totalorder %s33, 0
      %p194 = por %p192, %p193
      %p195 = scmp.ne.s32.totalorder %s183, %s184
      %p196 = scmp.eq.s32.totalorder %s34, 3
      %p197 = por %p195, %p196
      %p199 = scmp.ne.s32.totalorder %s184, %s198
      %p200 = scmp.eq.s32.totalorder %s34, 0
      %p201 = por %p199, %p200
      %s203 = sadd.s32 %s202, 1
      %p206 = scmp.eq.s32.totalorder %s28, 3
      %p207 = scmp.ne.s32.totalorder %s202, %s204
      %p208 = scmp.eq.s32.totalorder %s28, 0
      %p209 = por %p207, %p208
      %p210 = scmp.ne.s32.totalorder %s202, %s204
      %p211 = scmp.eq.s32.totalorder %s33, 3
      %p212 = por %p210, %p211
      %p213 = scmp.ne.s32.totalorder %s204, %s205
      %p214 = scmp.eq.s32.totalorder %s33, 0
      %p215 = por %p213, %p214
      %p216 = scmp.ne.s32.totalorder %s204, %s205
      %p217 = scmp.eq.s32.totalorder %s34, 3
      %p218 = por %p216, %p217
      %p220 = scmp.ne.s32.totalorder %s205, %s219
      %p221 = scmp.eq.s32.totalorder %s34, 0
      %p222 = por %p220, %p221
      %s224 = sadd.s32 %s223, 1
      %p227 = scmp.eq.s32.totalorder %s28, 3
      %p228 = scmp.ne.s32.totalorder %s223, %s225
      %p229 = scmp.eq.s32.totalorder %s28, 0
      %p230 = por %p228, %p229
      %p231 = scmp.ne.s32.totalorder %s223, %s225
      %p232 = scmp.eq.s32.totalorder %s33, 3
      %p233 = por %p231, %p232
      %p234 = scmp.ne.s32.totalorder %s225, %s226
      %p235 = scmp.eq.s32.totalorder %s33, 0
      %p236 = por %p234, %p235
      %p237 = scmp.ne.s32.totalorder %s225, %s226
      %p238 = scmp.eq.s32.totalorder %s34, 3
      %p239 = por %p237, %p238
      %p241 = scmp.ne.s32.totalorder %s226, %s240
      %p242 = scmp.eq.s32.totalorder %s34, 0
      %p243 = por %p241, %p242
      %s244 = ssub.s32 %s35, %s47
      %s245 = ssub.s32 %s36, %s43
      %s246 = sor.u32 %s244, %s245
      %p247 = scmp.eq.s32.totalorder %s246, 0
      %s249 = sadd.s32 %s248, 1
      %s250 = scalar_select %p247, %s248, %s249
      %p253 = pneg %p247
      %p254 = scmp.eq.s32.totalorder %s28, 3
      %p255 = por %p253, %p254
      %p256 = scmp.ne.s32.totalorder %s248, %s251
      %p257 = scmp.eq.s32.totalorder %s28, 0
      %p258 = por %p256, %p257
      %p259 = scmp.ne.s32.totalorder %s248, %s251
      %p260 = scmp.eq.s32.totalorder %s33, 3
      %p261 = por %p259, %p260
      %p262 = scmp.ne.s32.totalorder %s251, %s252
      %p263 = scmp.eq.s32.totalorder %s33, 0
      %p264 = por %p262, %p263
      %p265 = scmp.ne.s32.totalorder %s251, %s252
      %p266 = scmp.eq.s32.totalorder %s34, 3
      %p267 = por %p265, %p266
      %p269 = scmp.ne.s32.totalorder %s252, %s268
      %p270 = scmp.eq.s32.totalorder %s34, 0
      %p271 = por %p269, %p270
      %s272 = ssub.s32 %s35, %s47
      %s273 = ssub.s32 %s36, %s43
      %s274 = sor.u32 %s272, %s273
      %p275 = scmp.eq.s32.totalorder %s274, 0
      %s277 = sadd.s32 %s276, 1
      %s278 = scalar_select %p275, %s276, %s277
      %p281 = pneg %p275
      %p282 = scmp.eq.s32.totalorder %s28, 3
      %p283 = por %p281, %p282
      %p284 = scmp.ne.s32.totalorder %s276, %s279
      %p285 = scmp.eq.s32.totalorder %s28, 0
      %p286 = por %p284, %p285
      %p287 = scmp.ne.s32.totalorder %s276, %s279
      %p288 = scmp.eq.s32.totalorder %s33, 3
      %p289 = por %p287, %p288
      %p290 = scmp.ne.s32.totalorder %s279, %s280
      %p291 = scmp.eq.s32.totalorder %s33, 0
      %p292 = por %p290, %p291
      %p293 = scmp.ne.s32.totalorder %s279, %s280
      %p294 = scmp.eq.s32.totalorder %s34, 3
      %p295 = por %p293, %p294
      %p297 = scmp.ne.s32.totalorder %s280, %s296
      %p298 = scmp.eq.s32.totalorder %s34, 0
      %p299 = por %p297, %p298
      %s300 = ssub.s32 %s35, %s47
      %s301 = ssub.s32 %s36, %s43
      %s302 = sor.u32 %s300, %s301
      %p303 = scmp.eq.s32.totalorder %s302, 0
      %s305 = sadd.s32 %s304, 1
      %s306 = scalar_select %p303, %s304, %s305
      %p309 = pneg %p303
      %p310 = scmp.eq.s32.totalorder %s28, 3
      %p311 = por %p309, %p310
      %p312 = scmp.ne.s32.totalorder %s304, %s307
      %p313 = scmp.eq.s32.totalorder %s28, 0
      %p314 = por %p312, %p313
      %p315 = scmp.ne.s32.totalorder %s304, %s307
      %p316 = scmp.eq.s32.totalorder %s33, 3
      %p317 = por %p315, %p316
      %p318 = scmp.ne.s32.totalorder %s307, %s308
      %p319 = scmp.eq.s32.totalorder %s33, 0
      %p320 = por %p318, %p319
      %p321 = scmp.ne.s32.totalorder %s307, %s308
      %p322 = scmp.eq.s32.totalorder %s34, 3
      %p323 = por %p321, %p322
      %p325 = scmp.ne.s32.totalorder %s308, %s324
      %p326 = scmp.eq.s32.totalorder %s34, 0
      %p327 = por %p325, %p326
      %p328 = scmp.le.s32.totalorder 1, %s28
      %p329 = scmp.lt.s32.totalorder %s28, 5
      %p330 = pnand %p328, %p329
      %p331 = pneg %p330
      // Predicated region
      $region9: #{tpu_custom_call.1} parent=5 // pred_check
        _
      $region10: #{tpu_custom_call.1} parent=5 // pred_check_branch
        %333 = sbr.rel (%p330) target = $region12
      $region11: #{tpu_custom_call.1} parent=5 // pred_region
        %s334 = ssub.s32 %s28, 1
        // Predicated region
        $region13: #{tpu_custom_call.1} parent=11 // pred_check
          %p335 = pneg %p89
        $region14: #{tpu_custom_call.1} parent=11 // pred_check_branch
          %337 = sbr.rel (%p335) target = $region16
        $region15: #{tpu_custom_call.1} parent=11 // pred_region
          _
        $region16: #{tpu_custom_call.1} parent=11 // pred_fallthru
          _
        // Predicated region
        $region17: #{tpu_custom_call.1} parent=11 // pred_check
          %p338 = pneg %p110
        $region18: #{tpu_custom_call.1} parent=11 // pred_check_branch
          %340 = sbr.rel (%p338) target = $region20
        $region19: #{tpu_custom_call.1} parent=11 // pred_region
          _
        $region20: #{tpu_custom_call.1} parent=11 // pred_fallthru
          _
        // Predicated region
        $region21: #{tpu_custom_call.1} parent=11 // pred_check
          %p341 = pneg %p131
        $region22: #{tpu_custom_call.1} parent=11 // pred_check_branch
          %343 = sbr.rel (%p341) target = $region24
        $region23: #{tpu_custom_call.1} parent=11 // pred_region
          %s345 = ssub.s32 256, 256
          %346 = vsyncadd [#allocation6], %s345
          %s347 = sshll.u32 [#allocation5], 4
          %s348 = int_to_ptr.vmem [resolvable:$true] %s347
          %353 = dma.hbm_to_vmem [thread:$0]  %s3, 256, %s348, [#allocation6], 64, 64, 4
        $region24: #{tpu_custom_call.1} parent=11 // pred_fallthru
          _
        // Predicated region
        $region25: #{tpu_custom_call.1} parent=11 // pred_check
          %p354 = pneg %p152
        $region26: #{tpu_custom_call.1} parent=11 // pred_check_branch
          %356 = sbr.rel (%p354) target = $region28
        $region27: #{tpu_custom_call.1} parent=11 // pred_region
          %s358 = ssub.s32 256, 256
          %359 = vsyncadd [#allocation6], %s358
          %s360 = sshll.u32 [#allocation7], 4
          %s361 = int_to_ptr.vmem [resolvable:$true] %s360
          %366 = dma.hbm_to_vmem [thread:$0]  %s4, 256, %s361, [#allocation6], 64, 64, 4
        $region28: #{tpu_custom_call.1} parent=11 // pred_fallthru
          _
        // Predicated region
        $region29: #{tpu_custom_call.1} parent=11 // pred_check
          %p367 = pneg %p173
        $region30: #{tpu_custom_call.1} parent=11 // pred_check_branch
          %369 = sbr.rel (%p367) target = $region32
        $region31: #{tpu_custom_call.1} parent=11 // pred_region
          _
        $region32: #{tpu_custom_call.1} parent=11 // pred_fallthru
          _
        // Predicated region
        $region33: #{tpu_custom_call.1} parent=11 // pred_check
          %p370 = pneg %p194
        $region34: #{tpu_custom_call.1} parent=11 // pred_check_branch
          %372 = sbr.rel (%p370) target = $region36
        $region35: #{tpu_custom_call.1} parent=11 // pred_region
          _
        $region36: #{tpu_custom_call.1} parent=11 // pred_fallthru
          _
        // Predicated region
        $region37: #{tpu_custom_call.1} parent=11 // pred_check
          %p373 = pneg %p215
        $region38: #{tpu_custom_call.1} parent=11 // pred_check_branch
          %375 = sbr.rel (%p373) target = $region40
        $region39: #{tpu_custom_call.1} parent=11 // pred_region
          _
        $region40: #{tpu_custom_call.1} parent=11 // pred_fallthru
          _
        // Predicated region
        $region41: #{tpu_custom_call.1} parent=11 // pred_check
          %p376 = pneg %p236
        $region42: #{tpu_custom_call.1} parent=11 // pred_check_branch
          %378 = sbr.rel (%p376) target = $region44
        $region43: #{tpu_custom_call.1} parent=11 // pred_region
          _
        $region44: #{tpu_custom_call.1} parent=11 // pred_fallthru
          _
      $region12: #{tpu_custom_call.1} parent=5 // pred_fallthru
        _
      %p379 = scmp.lt.s32.totalorder %s28, 4
      // Predicated region
      $region45: #{tpu_custom_call.1} parent=5 // pred_check
        %p380 = pneg %p379
      $region46: #{tpu_custom_call.1} parent=5 // pred_check_branch
        %382 = sbr.rel (%p380) target = $region48
      $region47: #{tpu_custom_call.1} parent=5 // pred_region
        // Predicated region
        $region49: #{tpu_custom_call.1} parent=47 // pred_check
          %p383 = pneg %p62
        $region50: #{tpu_custom_call.1} parent=47 // pred_check_branch
          %385 = sbr.rel (%p383) target = $region52
        $region51: #{tpu_custom_call.1} parent=47 // pred_region
          %s386 = sand.u32 %s52, 1
          %s387 = scalar_lea.sflag [#allocation3], %s386
          %s388 = sand.u32 %s52, 1
          %s389 = smul.addr %s388, 4
          %s390 = scalar_lea.vmem [#allocation2], %s389
          %s392 = ssub.s32 64, 64
          %393 = vsyncadd %s387, %s392
          %s394 = smul.addr %s35, 2
          %s395 = sadd.s32 %s36, %s394
          %s396 = smul.addr %s395, 64
          %s397 = scalar_lea.hbm %s0, %s396
          %s399 = sshll.u32 %s390, 4
          %s400 = int_to_ptr.vmem [resolvable:$true] %s399
          %402 = dma.hbm_to_vmem [thread:$0]  %s397, 64, %s400, %s387
        $region52: #{tpu_custom_call.1} parent=47 // pred_fallthru
          _
      $region48: #{tpu_custom_call.1} parent=5 // pred_fallthru
        _
      %p403 = scmp.le.s32.totalorder 1, %s28
      %p404 = scmp.lt.s32.totalorder %s28, 5
      %p405 = pnand %p403, %p404
      %p406 = pneg %p405
      // Predicated region
      $region53: #{tpu_custom_call.1} parent=5 // pred_check
        _
      $region54: #{tpu_custom_call.1} parent=5 // pred_check_branch
        %408 = sbr.rel (%p405) target = $region56
      $region55: #{tpu_custom_call.1} parent=5 // pred_region
        %s409 = ssub.s32 %s28, 1
        %s410 = sand.u32 %s55, 1
        %s411 = scalar_lea.sflag [#allocation3], %s410
        %s412 = sand.u32 %s55, 1
        %s413 = smul.addr %s412, 4
        %s414 = scalar_lea.vmem [#allocation2], %s413
        // Predicated region
        $region57: #{tpu_custom_call.1} parent=55 // pred_check
          %p415 = pneg %p68
        $region58: #{tpu_custom_call.1} parent=55 // pred_check_branch
          %417 = sbr.rel (%p415) target = $region60
        $region59: #{tpu_custom_call.1} parent=55 // pred_region
          %418 = dma.done %s411, 64
        $region60: #{tpu_custom_call.1} parent=55 // pred_fallthru
          _
        // Predicated region
        $region61: #{tpu_custom_call.1} parent=55 // pred_check
          %p419 = pneg %p131
        $region62: #{tpu_custom_call.1} parent=55 // pred_check_branch
          %421 = sbr.rel (%p419) target = $region64
        $region63: #{tpu_custom_call.1} parent=55 // pred_region
          %422 = dma.done [#allocation6], 256
        $region64: #{tpu_custom_call.1} parent=55 // pred_fallthru
          _
        // Predicated region
        $region65: #{tpu_custom_call.1} parent=55 // pred_check
          %p423 = pneg %p152
        $region66: #{tpu_custom_call.1} parent=55 // pred_check_branch
          %425 = sbr.rel (%p423) target = $region68
        $region67: #{tpu_custom_call.1} parent=55 // pred_region
          %426 = dma.done [#allocation6], 256
        $region68: #{tpu_custom_call.1} parent=55 // pred_fallthru
          _
        %s427 = sand.u32 %s55, 1
        %s428 = scalar_lea.sflag [#allocation3], %s427
        %s429 = sand.u32 %s55, 1
        %s430 = smul.addr %s429, 4
        %s431 = scalar_lea.vmem [#allocation2], %s430
        %p432 = pneg %p68
        %p433 = pneg %p65
        %p434 = pneg %p89
        %p435 = pneg %p86
        %p436 = pneg %p110
        %p437 = pneg %p107
        %p438 = pneg %p131
        %p439 = pneg %p128
        %p440 = pneg %p152
        %p441 = pneg %p149
        %p442 = pneg %p173
        %p443 = pneg %p170
        %p444 = pneg %p194
        %p445 = pneg %p191
        %p446 = pneg %p215
        %p447 = pneg %p212
        %p448 = pneg %p236
        %p449 = pneg %p233
        %p450 = pneg %p264
        %p451 = pneg %p261
        %s452 = sand.u32 %s251, 1
        %s453 = scalar_lea.sflag [#allocation4], %s452
        %s454 = sand.u32 %s251, 1
        %s455 = smul.addr %s454, 4
        %s456 = scalar_lea.vmem [#allocation8], %s455
        %p457 = pneg %p292
        %p458 = pneg %p289
        %s459 = sand.u32 %s33, 1
        %s460 = scalar_lea.sflag [#allocation10], %s459
        %s461 = sand.u32 %s279, 1
        %s462 = smul.addr %s461, 4
        %s463 = scalar_lea.vmem [#allocation9], %s462
        %p464 = pneg %p320
        %p465 = pneg %p317
        %s466 = sand.u32 %s33, 1
        %s467 = scalar_lea.sflag [#allocation10], %s466
        %s468 = sand.u32 %s307, 1
        %s469 = smul.addr %s468, 4
        %s470 = scalar_lea.vmem [#allocation11], %s469
        %v472 = vld [vmem:[%s414] sm:$0xf]
        %v473 = vunpack.c.l.bf16 %v472
        %v474 = vld [vmem:[%s1] sm:$0x1]
        %v475 = vld [vmem:[%s2] sm:$0x1]
        %vm476 = vcmask 261120
        %v477 = vsel %vm476, %v473, 0.0
        %478 = vadd.xlane.f32.xlu0 %v477
        %v479 = vpop.xlane.xlu0 %478
        %v480 = vrcp.pop 32.0
        %v481 = vmul.f32 %v479, %v480
        %v482 = vsub.f32 %v473, %v481
        %v483 = vmul.f32 %v482, %v482
        %v484 = vsel %vm476, %v483, 0.0
        %485 = vadd.xlane.f32.xlu0 %v484
        %v486 = vpop.xlane.xlu0 %485
        %v487 = vmul.f32 %v486, %v480
        %v488 = vadd.f32 %v487, 1e-05
        %v489 = vrsqrt.pop %v488
        %v490 = vmul.f32 %v482, %v489
        %v492 = vlaneseq
        %v493 = vshrl.u32 %v492, 7
        %v494 = vsub.s32 0, %v493
        %v495 = vrot.slane %v474, %v494
        %v497 = vmul.f32 %v490, %v495
        %v499 = vlaneseq
        %v500 = vshrl.u32 %v499, 7
        %v501 = vsub.s32 0, %v500
        %v502 = vrot.slane %v475, %v501
        %v504 = vadd.f32 %v497, %v502
        %v505 = vpack.c.bf16 %v504, %v504
        %v506 = vld [vmem:[#allocation5] sm:$0xf]
        %v507 = vld [vmem:[#allocation5 + $0x4] sm:$0xf]
        %v508 = vld [vmem:[#allocation5 + $0x8] sm:$0xf]
        %v509 = vld [vmem:[#allocation5 + $0xc] sm:$0xf]
        %v510 = vld [vmem:[%s6] sm:$0x1]
        %v512 = vlaneseq
        %v513 = vshrl.u32 %v512, 7
        %v514 = vsub.s32 0, %v513
        %v515 = vrot.slane %v510, %v514
        %v521 = vunpack.c.l.b16 %v506
        %v522 = vunpack.c.l.b16 %v507
        %v523 = vunpack.c.l.b16 %v508
        %v524 = vunpack.c.l.b16 %v509
        %v525 = vpack.c.b16 %v522, %v521
        %v526 = vpack.c.b16 %v524, %v523
        %v530 = vsel %vm476, %v505, 0
        %532 = vmatprep.subr.bf16.mxu0 0
        %533 = vmatpush1.bf16.msra.mxu0 %v525
        %534 = vmatprep.subr.bf16.mxu0 0
        %535 = vmatpush1.bf16.msra.mxu0 %v526
        %536 = vmatprep.subr.bf16.mxu0 0
        %537 = vmatpush1.bf16.msra.mxu0 0
        %538 = vmatprep.subr.bf16.mxu0 0
        %539 = vmatpush1.bf16.msra.mxu0 0
        %540 = vmatprep.subr.bf16.mxu0 0
        %541 = vmatpush1.bf16.msra.mxu0 0
        %542 = vmatprep.subr.bf16.mxu0 0
        %543 = vmatpush1.bf16.msra.mxu0 0
        %544 = vmatprep.subr.bf16.mxu0 0
        %545 = vmatpush1.bf16.msra.mxu0 0
        %546 = vmatprep.subr.bf16.mxu0 0
        %547 = vmatpush1.bf16.msra.mxu0 0
        %548 = vmatprep.subr.bf16.mxu0 0
        %549 = vmatpush1.bf16.msra.mxu0 0
        %550 = vmatprep.subr.bf16.mxu0 0
        %551 = vmatpush1.bf16.msra.mxu0 0
        %552 = vmatprep.subr.bf16.mxu0 0
        %553 = vmatpush1.bf16.msra.mxu0 0
        %554 = vmatprep.subr.bf16.mxu0 0
        %555 = vmatpush1.bf16.msra.mxu0 0
        %556 = vmatprep.subr.bf16.mxu0 0
        %557 = vmatpush1.bf16.msra.mxu0 0
        %558 = vmatprep.subr.bf16.mxu0 0
        %559 = vmatpush1.bf16.msra.mxu0 0
        %560 = vmatprep.subr.bf16.mxu0 0
        %561 = vmatpush1.bf16.msra.mxu0 0
        %562 = vmatprep.subr.bf16.mxu0 0
        %563 = vmatpush1.bf16.msra.mxu0 0
        %564 = vmatprep.mubr.bf16.mxu0 0
        %565 = vmatmul.mubr.bf16.gmra.mrb[0].mxu0 %v530
        %v566 = vpop.f32.mrb[0].mxu0
        %v567 = vadd.f32 %v515, %v566
        %v568 = vpop.f32.mrb[0].mxu0
        %v569 = vpop.f32.mrb[0].mxu0
        %v570 = vpop.f32.mrb[0].mxu0
        %571 = vdwg.mxu0
        %v572 = vpack.c.bf16 %v567, %v567
        %vm573 = vcmask 257024
        %574 = vst.msk [vmem:[%s456] sm:$0xf] %vm573, %v572
        %v575 = vld [vmem:[#allocation7] sm:$0xf]
        %v576 = vld [vmem:[#allocation7 + $0x4] sm:$0xf]
        %v577 = vld [vmem:[#allocation7 + $0x8] sm:$0xf]
        %v578 = vld [vmem:[#allocation7 + $0xc] sm:$0xf]
        %v579 = vld [vmem:[%s7] sm:$0x1]
        %v581 = vlaneseq
        %v582 = vshrl.u32 %v581, 7
        %v583 = vsub.s32 0, %v582
        %v584 = vrot.slane %v579, %v583
        %v590 = vunpack.c.l.b16 %v575
        %v591 = vunpack.c.l.b16 %v576
        %v592 = vunpack.c.l.b16 %v577
        %v593 = vunpack.c.l.b16 %v578
        %v594 = vpack.c.b16 %v591, %v590
        %v595 = vpack.c.b16 %v593, %v592
        %598 = vmatprep.subr.bf16.mxu0 0
        %599 = vmatpush1.bf16.msra.mxu0 %v594
        %600 = vmatprep.subr.bf16.mxu0 0
        %601 = vmatpush1.bf16.msra.mxu0 %v595
        %602 = vmatprep.subr.bf16.mxu0 0
        %603 = vmatpush1.bf16.msra.mxu0 0
        %604 = vmatprep.subr.bf16.mxu0 0
        %605 = vmatpush1.bf16.msra.mxu0 0
        %606 = vmatprep.subr.bf16.mxu0 0
        %607 = vmatpush1.bf16.msra.mxu0 0
        %608 = vmatprep.subr.bf16.mxu0 0
        %609 = vmatpush1.bf16.msra.mxu0 0
        %610 = vmatprep.subr.bf16.mxu0 0
        %611 = vmatpush1.bf16.msra.mxu0 0
        %612 = vmatprep.subr.bf16.mxu0 0
        %613 = vmatpush1.bf16.msra.mxu0 0
        %614 = vmatprep.subr.bf16.mxu0 0
        %615 = vmatpush1.bf16.msra.mxu0 0
        %616 = vmatprep.subr.bf16.mxu0 0
        %617 = vmatpush1.bf16.msra.mxu0 0
        %618 = vmatprep.subr.bf16.mxu0 0
        %619 = vmatpush1.bf16.msra.mxu0 0
        %620 = vmatprep.subr.bf16.mxu0 0
        %621 = vmatpush1.bf16.msra.mxu0 0
        %622 = vmatprep.subr.bf16.mxu0 0
        %623 = vmatpush1.bf16.msra.mxu0 0
        %624 = vmatprep.subr.bf16.mxu0 0
        %625 = vmatpush1.bf16.msra.mxu0 0
        %626 = vmatprep.subr.bf16.mxu0 0
        %627 = vmatpush1.bf16.msra.mxu0 0
        %628 = vmatprep.subr.bf16.mxu0 0
        %629 = vmatpush1.bf16.msra.mxu0 0
        %630 = vmatprep.mubr.bf16.mxu0 0
        %631 = vmatmul.mubr.bf16.gmra.mrb[0].mxu0 %v530
        %v632 = vpop.f32.mrb[0].mxu0
        %v633 = vadd.f32 %v584, %v632
        %v634 = vpop.f32.mrb[0].mxu0
        %v635 = vpop.f32.mrb[0].mxu0
        %v636 = vpop.f32.mrb[0].mxu0
        %637 = vdwg.mxu0
        %v638 = vpack.c.bf16 %v633, %v633
        %639 = vst.msk [vmem:[%s463] sm:$0xf] %vm573, %v638
        %v640 = vld [vmem:[%s5] sm:$0xf]
        %v641 = vld [vmem:[%s5 + $0x4] sm:$0xf]
        %v642 = vld [vmem:[%s5 + $0x8] sm:$0xf]
        %v643 = vld [vmem:[%s5 + $0xc] sm:$0xf]
        %v644 = vld [vmem:[%s8] sm:$0x1]
        %v646 = vlaneseq
        %v647 = vshrl.u32 %v646, 7
        %v648 = vsub.s32 0, %v647
        %v649 = vrot.slane %v644, %v648
        %v655 = vunpack.c.l.b16 %v640
        %v656 = vunpack.c.l.b16 %v641
        %v657 = vunpack.c.l.b16 %v642
        %v658 = vunpack.c.l.b16 %v643
        %v659 = vpack.c.b16 %v656, %v655
        %v660 = vpack.c.b16 %v658, %v657
        %663 = vmatprep.subr.bf16.mxu0 0
        %664 = vmatpush1.bf16.msra.mxu0 %v659
        %665 = vmatprep.subr.bf16.mxu0 0
        %666 = vmatpush1.bf16.msra.mxu0 %v660
        %667 = vmatprep.subr.bf16.mxu0 0
        %668 = vmatpush1.bf16.msra.mxu0 0
        %669 = vmatprep.subr.bf16.mxu0 0
        %670 = vmatpush1.bf16.msra.mxu0 0
        %671 = vmatprep.subr.bf16.mxu0 0
        %672 = vmatpush1.bf16.msra.mxu0 0
        %673 = vmatprep.subr.bf16.mxu0 0
        %674 = vmatpush1.bf16.msra.mxu0 0
        %675 = vmatprep.subr.bf16.mxu0 0
        %676 = vmatpush1.bf16.msra.mxu0 0
        %677 = vmatprep.subr.bf16.mxu0 0
        %678 = vmatpush1.bf16.msra.mxu0 0
        %679 = vmatprep.subr.bf16.mxu0 0
        %680 = vmatpush1.bf16.msra.mxu0 0
        %681 = vmatprep.subr.bf16.mxu0 0
        %682 = vmatpush1.bf16.msra.mxu0 0
        %683 = vmatprep.subr.bf16.mxu0 0
        %684 = vmatpush1.bf16.msra.mxu0 0
        %685 = vmatprep.subr.bf16.mxu0 0
        %686 = vmatpush1.bf16.msra.mxu0 0
        %687 = vmatprep.subr.bf16.mxu0 0
        %688 = vmatpush1.bf16.msra.mxu0 0
        %689 = vmatprep.subr.bf16.mxu0 0
        %690 = vmatpush1.bf16.msra.mxu0 0
        %691 = vmatprep.subr.bf16.mxu0 0
        %692 = vmatpush1.bf16.msra.mxu0 0
        %693 = vmatprep.subr.bf16.mxu0 0
        %694 = vmatpush1.bf16.msra.mxu0 0
        %695 = vmatprep.mubr.bf16.mxu0 0
        %696 = vmatmul.mubr.bf16.gmra.mrb[0].mxu0 %v530
        %v697 = vpop.f32.mrb[0].mxu0
        %v698 = vadd.f32 %v649, %v697
        %v699 = vpop.f32.mrb[0].mxu0
        %v700 = vpop.f32.mrb[0].mxu0
        %v701 = vpop.f32.mrb[0].mxu0
        %702 = vdwg.mxu0
        %v703 = vpack.c.bf16 %v698, %v698
        %704 = vst.msk [vmem:[%s470] sm:$0xf] %vm573, %v703
        %s705 = sand.u32 %s251, 1
        %s706 = scalar_lea.sflag [#allocation4], %s705
        %s707 = sand.u32 %s251, 1
        %s708 = smul.addr %s707, 4
        %s709 = scalar_lea.vmem [#allocation8], %s708
        %s710 = sand.u32 %s33, 1
        %s711 = scalar_lea.sflag [#allocation10], %s710
        %s712 = sand.u32 %s279, 1
        %s713 = smul.addr %s712, 4
        %s714 = scalar_lea.vmem [#allocation9], %s713
        %s715 = sand.u32 %s33, 1
        %s716 = scalar_lea.sflag [#allocation10], %s715
        %s717 = sand.u32 %s307, 1
        %s718 = smul.addr %s717, 4
        %s719 = scalar_lea.vmem [#allocation11], %s718
        // Predicated region
        $region69: #{tpu_custom_call.1} parent=55 // pred_check
          %p720 = pneg %p261
        $region70: #{tpu_custom_call.1} parent=55 // pred_check_branch
          %722 = sbr.rel (%p720) target = $region72
        $region71: #{tpu_custom_call.1} parent=55 // pred_region
          %s724 = ssub.s32 64, 64
          %725 = vsyncadd %s706, %s724
          %s726 = smul.addr %s37, 2
          %s727 = sadd.s32 %s38, %s726
          %s728 = smul.addr %s727, 64
          %s729 = scalar_lea.hbm %s9, %s728
          %s731 = sshll.u32 %s709, 4
          %s732 = int_to_ptr.vmem [resolvable:$true] %s731
          %734 = dma.vmem_to_hbm [thread:$0]  %s732, 64, %s729, %s706
        $region72: #{tpu_custom_call.1} parent=55 // pred_fallthru
          _
        // Predicated region
        $region73: #{tpu_custom_call.1} parent=55 // pred_check
          %p735 = pneg %p289
        $region74: #{tpu_custom_call.1} parent=55 // pred_check_branch
          %737 = sbr.rel (%p735) target = $region76
        $region75: #{tpu_custom_call.1} parent=55 // pred_region
          %s739 = ssub.s32 64, 64
          %740 = vsyncadd %s711, %s739
          %s741 = smul.addr %s37, 2
          %s742 = sadd.s32 %s38, %s741
          %s743 = smul.addr %s742, 64
          %s744 = scalar_lea.hbm %s10, %s743
          %s746 = sshll.u32 %s714, 4
          %s747 = int_to_ptr.vmem [resolvable:$true] %s746
          %749 = dma.vmem_to_hbm [thread:$0]  %s747, 64, %s744, %s711
        $region76: #{tpu_custom_call.1} parent=55 // pred_fallthru
          _
        // Predicated region
        $region77: #{tpu_custom_call.1} parent=55 // pred_check
          %p750 = pneg %p317
        $region78: #{tpu_custom_call.1} parent=55 // pred_check_branch
          %752 = sbr.rel (%p750) target = $region80
        $region79: #{tpu_custom_call.1} parent=55 // pred_region
          %s754 = ssub.s32 64, 64
          %755 = vsyncadd %s716, %s754
          %s756 = smul.addr %s37, 2
          %s757 = sadd.s32 %s38, %s756
          %s758 = smul.addr %s757, 64
          %s759 = scalar_lea.hbm %s11, %s758
          %s761 = sshll.u32 %s719, 4
          %s762 = int_to_ptr.vmem [resolvable:$true] %s761
          %764 = dma.vmem_to_hbm [thread:$0]  %s762, 64, %s759, %s716
        $region80: #{tpu_custom_call.1} parent=55 // pred_fallthru
          _
      $region56: #{tpu_custom_call.1} parent=5 // pred_fallthru
        _
      %p765 = scmp.le.s32.totalorder 2, %s28
      // Predicated region
      $region81: #{tpu_custom_call.1} parent=5 // pred_check
        %p766 = pneg %p765
      $region82: #{tpu_custom_call.1} parent=5 // pred_check_branch
        %768 = sbr.rel (%p766) target = $region84
      $region83: #{tpu_custom_call.1} parent=5 // pred_region
        %s769 = ssub.s32 %s28, 2
        // Predicated region
        $region85: #{tpu_custom_call.1} parent=83 // pred_check
          %p770 = pneg %p267
        $region86: #{tpu_custom_call.1} parent=83 // pred_check_branch
          %772 = sbr.rel (%p770) target = $region88
        $region87: #{tpu_custom_call.1} parent=83 // pred_region
          %s773 = sand.u32 %s252, 1
          %s774 = scalar_lea.sflag [#allocation4], %s773
          %s775 = sand.u32 %s252, 1
          %s776 = smul.addr %s775, 4
          %s777 = scalar_lea.vmem [#allocation8], %s776
          %778 = dma.done %s774, 64
        $region88: #{tpu_custom_call.1} parent=83 // pred_fallthru
          _
        // Predicated region
        $region89: #{tpu_custom_call.1} parent=83 // pred_check
          %p779 = pneg %p295
        $region90: #{tpu_custom_call.1} parent=83 // pred_check_branch
          %781 = sbr.rel (%p779) target = $region92
        $region91: #{tpu_custom_call.1} parent=83 // pred_region
          %s782 = sand.u32 %s34, 1
          %s783 = scalar_lea.sflag [#allocation10], %s782
          %s784 = sand.u32 %s280, 1
          %s785 = smul.addr %s784, 4
          %s786 = scalar_lea.vmem [#allocation9], %s785
          %787 = dma.done %s783, 64
        $region92: #{tpu_custom_call.1} parent=83 // pred_fallthru
          _
        // Predicated region
        $region93: #{tpu_custom_call.1} parent=83 // pred_check
          %p788 = pneg %p323
        $region94: #{tpu_custom_call.1} parent=83 // pred_check_branch
          %790 = sbr.rel (%p788) target = $region96
        $region95: #{tpu_custom_call.1} parent=83 // pred_region
          %s791 = sand.u32 %s34, 1
          %s792 = scalar_lea.sflag [#allocation10], %s791
          %s793 = sand.u32 %s308, 1
          %s794 = smul.addr %s793, 4
          %s795 = scalar_lea.vmem [#allocation11], %s794
          %796 = dma.done %s792, 64
        $region96: #{tpu_custom_call.1} parent=83 // pred_fallthru
          _
      $region84: #{tpu_custom_call.1} parent=5 // pred_fallthru
        _
    $region6: #{tpu_custom_call.1} parent=1 // loop_footer
      %s32 = sadd.s32 1, %s28
    $region7: #{tpu_custom_call.1} parent=1 // loop_footer_branch
      %27 = sbr.rel target = $region3
    $region8: #{tpu_custom_call.1} parent=1 // loop_exit
      _
    %797 = vsyncpa [#allocation3], 1
    %s798 = scalar_lea.sflag [#allocation3], 1
    %799 = vsyncpa %s798, 1
    %800 = vsyncpa [#allocation6], 1
    %801 = vsyncpa [#allocation4], 1
    %s802 = scalar_lea.sflag [#allocation4], 1
    %803 = vsyncpa %s802, 1
    %804 = vsyncpa [#allocation10], 1
    %s805 = scalar_lea.sflag [#allocation10], 1
    %806 = vsyncpa %s805, 1

// kernel: tpu_custom_call.1
$region0: #{tpu_custom_call.1}
  #allocation0 [shape = 'u32[]', space=smem, size = 0x4, offset = 0x4, fixed_abs, tag = 'smem constant byte address 0x4 - core index']
  #allocation1 [shape = 'u32[144,128]{1,0:T(1,128)}', space=vmem, size = 0x12000, scoped, tag = 'internal scratch']
  %s0 = inlined_call_operand.hbm [shape: bf16[2,16,32], index: 0, kind: input, shape index: {}]
  %s1 = inlined_call_operand.vmem [shape: f32[1,32], index: 1, kind: input, shape index: {}]
  %s2 = inlined_call_operand.vmem [shape: f32[1,32], index: 2, kind: input, shape index: {}]
  %s3 = inlined_call_operand.hbm [shape: bf16[32,32], index: 3, kind: input, shape index: {}]
  %s4 = inlined_call_operand.hbm [shape: bf16[32,32], index: 4, kind: input, shape index: {}]
  %s5 = inlined_call_operand.vmem [shape: bf16[32,32], index: 5, kind: input, shape index: {}]
  %s6 = inlined_call_operand.vmem [shape: f32[1,32], index: 6, kind: input, shape index: {}]
  %s7 = inlined_call_operand.vmem [shape: f32[1,32], index: 7, kind: input, shape index: {}]
  %s8 = inlined_call_operand.vmem [shape: f32[1,32], index: 8, kind: input, shape index: {}]
  %s9 = inlined_call_operand.hbm [shape: bf16[2,16,32], index: 9, kind: output, shape index: {0}]
  %s10 = inlined_call_operand.hbm [shape: bf16[2,16,32], index: 10, kind: output, shape index: {1}]
  %s11 = inlined_call_operand.hbm [shape: bf16[2,16,32], index: 11, kind: output, shape index: {2}]
  %12 = xla_tuple %s9, %s10, %s11
  %s13 = sld [smem:[#allocation0]]
  $region97: #{tpu_custom_call.1} parent=0
    _
  %s15 = ssub.s32 1, %s13
  %s16 = scalar_select 0, %s15, %s13
  $region1: #{tpu_custom_call.1} parent=0
    #allocation2 [shape = 'u8[4096]{0}', space=vmem, size = 0x1000, scoped, tag = 'input window, operand 0']
    #allocation3 [shape = 's32[2]{0}', space=sflag, size = 0x8, scoped, tag = 'scoped memory for tpu_custom_call.1']
    #allocation4 [shape = 's32[2]{0}', space=sflag, size = 0x8, scoped, tag = 'scoped memory for tpu_custom_call.1']
    #allocation5 [shape = 'u8[8192]{0}', space=vmem, size = 0x2000, scoped, tag = 'input window, operand 3, single buffered']
    #allocation6 [shape = 's32[1]{0}', space=sflag, size = 0x4, scoped, tag = 'scoped memory for tpu_custom_call.1']
    #allocation7 [shape = 'u8[8192]{0}', space=vmem, size = 0x2000, scoped, tag = 'input window, operand 4, single buffered']
    #allocation8 [shape = 'u8[4096]{0}', space=vmem, size = 0x1000, scoped, tag = 'output window, operand 0']
    #allocation9 [shape = 'u8[4096]{0}', space=vmem, size = 0x1000, scoped, tag = 'output window, operand 1']
    #allocation10 [shape = 's32[2]{0}', space=sflag, size = 0x8, scoped, tag = 'scoped memory for tpu_custom_call.1']
    #allocation11 [shape = 'u8[4096]{0}', space=vmem, size = 0x1000, scoped, tag = 'output window, operand 2']
    %17 = vsyncpa [#allocation3], 0
    %s18 = scalar_lea.sflag [#allocation3], 1
    %19 = vsyncpa %s18, 0
    %20 = vsyncpa [#allocation6], 0
    %21 = vsyncpa [#allocation4], 0
    %s22 = scalar_lea.sflag [#allocation4], 1
    %23 = vsyncpa %s22, 0
    %24 = vsyncpa [#allocation10], 0
    %s25 = scalar_lea.sflag [#allocation10], 1
    %26 = vsyncpa %s25, 0
    loop: start=0, step=1, limit=6
    $region2: #{tpu_custom_call.1} parent=1 // loop_pre_header
      _
    $region3: #{tpu_custom_call.1} parent=1 // loop_header
      %s28 = sphi 0, %s32
      %p29 = scmp.ge.s32.totalorder %s28, 6
      %s35 = sphi 0, %s47
      %s36 = sphi 0, %s43
      %s37 = sphi 0, %s35
      %s38 = sphi 0, %s36
      %s39 = sphi 0, %s37
      %s40 = sphi 0, %s38
      %s52 = sphi 0, %s54
      %s55 = sphi 0, %s52
      %s56 = sphi 0, %s55
      %s72 = sphi 0, %s56
      %s76 = sphi 0, %s76
      %s78 = sphi 0, %s76
      %s79 = sphi 0, %s78
      %s93 = sphi 0, %s79
      %s97 = sphi 0, %s97
      %s99 = sphi 0, %s97
      %s100 = sphi 0, %s99
      %s114 = sphi 0, %s100
      %s118 = sphi 0, %s118
      %s120 = sphi 0, %s118
      %s121 = sphi 0, %s120
      %s135 = sphi 0, %s121
      %s139 = sphi 0, %s139
      %s141 = sphi 0, %s139
      %s142 = sphi 0, %s141
      %s156 = sphi 0, %s142
      %s160 = sphi 0, %s160
      %s162 = sphi 0, %s160
      %s163 = sphi 0, %s162
      %s177 = sphi 0, %s163
      %s181 = sphi 0, %s181
      %s183 = sphi 0, %s181
      %s184 = sphi 0, %s183
      %s198 = sphi 0, %s184
      %s202 = sphi 0, %s202
      %s204 = sphi 0, %s202
      %s205 = sphi 0, %s204
      %s219 = sphi 0, %s205
      %s223 = sphi 0, %s223
      %s225 = sphi 0, %s223
      %s226 = sphi 0, %s225
      %s240 = sphi 0, %s226
      %s248 = sphi 0, %s250
      %s251 = sphi 0, %s248
      %s252 = sphi 0, %s251
      %s268 = sphi 0, %s252
      %s276 = sphi 0, %s278
      %s279 = sphi 0, %s276
      %s280 = sphi 0, %s279
      %s296 = sphi 0, %s280
      %s304 = sphi 0, %s306
      %s307 = sphi 0, %s304
      %s308 = sphi 0, %s307
      %s324 = sphi 0, %s308
    $region4: #{tpu_custom_call.1} parent=1 // loop_header_branch
      %31 = sbr.rel (%p29) target = $region8
    $region5: #{tpu_custom_call.1} parent=1 // loop_body
      %s33 = ssub.s32 %s28, 1
      %s34 = ssub.s32 %s28, 2
      %s41 = sadd.s32 1, %s36
      %p42 = scmp.ge.s32.totalorder %s41, 2
      %s43 = scalar_select %p42, 0, %s41
      %s44 = sadd.s32 1, %s35
      %s45 = scalar_select %p42, %s44, %s35
      %p46 = scmp.ge.s32.totalorder %s45, 2
      %s47 = scalar_select %p46, 0, %s45
      %s48 = ssub.s32 %s35, %s47
      %s49 = ssub.s32 %s36, %s43
      %s50 = sor.u32 %s48, %s49
      %p51 = scmp.eq.s32.totalorder %s50, 0
      %s53 = sadd.s32 %s52, 1
      %s54 = scalar_select %p51, %s52, %s53
      %p57 = pneg %p51
      %p58 = scmp.eq.s32.totalorder %s28, 3
      %p59 = por %p57, %p58
      %p60 = scmp.ne.s32.totalorder %s52, %s55
      %p61 = scmp.eq.s32.totalorder %s28, 0
      %p62 = por %p60, %p61
      %p63 = scmp.ne.s32.totalorder %s52, %s55
      %p64 = scmp.eq.s32.totalorder %s33, 3
      %p65 = por %p63, %p64
      %p66 = scmp.ne.s32.totalorder %s55, %s56
      %p67 = scmp.eq.s32.totalorder %s33, 0
      %p68 = por %p66, %p67
      %p69 = scmp.ne.s32.totalorder %s55, %s56
      %p70 = scmp.eq.s32.totalorder %s34, 3
      %p71 = por %p69, %p70
      %p73 = scmp.ne.s32.totalorder %s56, %s72
      %p74 = scmp.eq.s32.totalorder %s34, 0
      %p75 = por %p73, %p74
      %s77 = sadd.s32 %s76, 1
      %p80 = scmp.eq.s32.totalorder %s28, 3
      %p81 = scmp.ne.s32.totalorder %s76, %s78
      %p82 = scmp.eq.s32.totalorder %s28, 0
      %p83 = por %p81, %p82
      %p84 = scmp.ne.s32.totalorder %s76, %s78
      %p85 = scmp.eq.s32.totalorder %s33, 3
      %p86 = por %p84, %p85
      %p87 = scmp.ne.s32.totalorder %s78, %s79
      %p88 = scmp.eq.s32.totalorder %s33, 0
      %p89 = por %p87, %p88
      %p90 = scmp.ne.s32.totalorder %s78, %s79
      %p91 = scmp.eq.s32.totalorder %s34, 3
      %p92 = por %p90, %p91
      %p94 = scmp.ne.s32.totalorder %s79, %s93
      %p95 = scmp.eq.s32.totalorder %s34, 0
      %p96 = por %p94, %p95
      %s98 = sadd.s32 %s97, 1
      %p101 = scmp.eq.s32.totalorder %s28, 3
      %p102 = scmp.ne.s32.totalorder %s97, %s99
      %p103 = scmp.eq.s32.totalorder %s28, 0
      %p104 = por %p102, %p103
      %p105 = scmp.ne.s32.totalorder %s97, %s99
      %p106 = scmp.eq.s32.totalorder %s33, 3
      %p107 = por %p105, %p106
      %p108 = scmp.ne.s32.totalorder %s99, %s100
      %p109 = scmp.eq.s32.totalorder %s33, 0
      %p110 = por %p108, %p109
      %p111 = scmp.ne.s32.totalorder %s99, %s100
      %p112 = scmp.eq.s32.totalorder %s34, 3
      %p113 = por %p111, %p112
      %p115 = scmp.ne.s32.totalorder %s100, %s114
      %p116 = scmp.eq.s32.totalorder %s34, 0
      %p117 = por %p115, %p116
      %s119 = sadd.s32 %s118, 1
      %p122 = scmp.eq.s32.totalorder %s28, 3
      %p123 = scmp.ne.s32.totalorder %s118, %s120
      %p124 = scmp.eq.s32.totalorder %s28, 0
      %p125 = por %p123, %p124
      %p126 = scmp.ne.s32.totalorder %s118, %s120
      %p127 = scmp.eq.s32.totalorder %s33, 3
      %p128 = por %p126, %p127
      %p129 = scmp.ne.s32.totalorder %s120, %s121
      %p130 = scmp.eq.s32.totalorder %s33, 0
      %p131 = por %p129, %p130
      %p132 = scmp.ne.s32.totalorder %s120, %s121
      %p133 = scmp.eq.s32.totalorder %s34, 3
      %p134 = por %p132, %p133
      %p136 = scmp.ne.s32.totalorder %s121, %s135
      %p137 = scmp.eq.s32.totalorder %s34, 0
      %p138 = por %p136, %p137
      %s140 = sadd.s32 %s139, 1
      %p143 = scmp.eq.s32.totalorder %s28, 3
      %p144 = scmp.ne.s32.totalorder %s139, %s141
      %p145 = scmp.eq.s32.totalorder %s28, 0
      %p146 = por %p144, %p145
      %p147 = scmp.ne.s32.totalorder %s139, %s141
      %p148 = scmp.eq.s32.totalorder %s33, 3
      %p149 = por %p147, %p148
      %p150 = scmp.ne.s32.totalorder %s141, %s142
      %p151 = scmp.eq.s32.totalorder %s33, 0
      %p152 = por %p150, %p151
      %p153 = scmp.ne.s32.totalorder %s141, %s142
      %p154 = scmp.eq.s32.totalorder %s34, 3
      %p155 = por %p153, %p154
      %p157 = scmp.ne.s32.totalorder %s142, %s156
      %p158 = scmp.eq.s32.totalorder %s34, 0
      %p159 = por %p157, %p158
      %s161 = sadd.s32 %s160, 1
      %p164 = scmp.eq.s32.totalorder %s28, 3
      %p165 = scmp.ne.s32.totalorder %s160, %s162
      %p166 = scmp.eq.s32.totalorder %s28, 0
      %p167 = por %p165, %p166
      %p168 = scmp.ne.s32.totalorder %s160, %s162
      %p169 = scmp.eq.s32.totalorder %s33, 3
      %p170 = por %p168, %p169
      %p171 = scmp.ne.s32.totalorder %s162, %s163
      %p172 = scmp.eq.s32.totalorder %s33, 0
      %p173 = por %p171, %p172
      %p174 = scmp.ne.s32.totalorder %s162, %s163
      %p175 = scmp.eq.s32.totalorder %s34, 3
      %p176 = por %p174, %p175
      %p178 = scmp.ne.s32.totalorder %s163, %s177
      %p179 = scmp.eq.s32.totalorder %s34, 0
      %p180 = por %p178, %p179
      %s182 = sadd.s32 %s181, 1
      %p185 = scmp.eq.s32.totalorder %s28, 3
      %p186 = scmp.ne.s32.totalorder %s181, %s183
      %p187 = scmp.eq.s32.totalorder %s28, 0
      %p188 = por %p186, %p187
      %p189 = scmp.ne.s32.totalorder %s181, %s183
      %p190 = scmp.eq.s32.totalorder %s33, 3
      %p191 = por %p189, %p190
      %p192 = scmp.ne.s32.totalorder %s183, %s184
      %p193 = scmp.eq.s32.totalorder %s33, 0
      %p194 = por %p192, %p193
      %p195 = scmp.ne.s32.totalorder %s183, %s184
      %p196 = scmp.eq.s32.totalorder %s34, 3
      %p197 = por %p195, %p196
      %p199 = scmp.ne.s32.totalorder %s184, %s198
      %p200 = scmp.eq.s32.totalorder %s34, 0
      %p201 = por %p199, %p200
      %s203 = sadd.s32 %s202, 1
      %p206 = scmp.eq.s32.totalorder %s28, 3
      %p207 = scmp.ne.s32.totalorder %s202, %s204
      %p208 = scmp.eq.s32.totalorder %s28, 0
      %p209 = por %p207, %p208
      %p210 = scmp.ne.s32.totalorder %s202, %s204
      %p211 = scmp.eq.s32.totalorder %s33, 3
      %p212 = por %p210, %p211
      %p213 = scmp.ne.s32.totalorder %s204, %s205
      %p214 = scmp.eq.s32.totalorder %s33, 0
      %p215 = por %p213, %p214
      %p216 = scmp.ne.s32.totalorder %s204, %s205
      %p217 = scmp.eq.s32.totalorder %s34, 3
      %p218 = por %p216, %p217
      %p220 = scmp.ne.s32.totalorder %s205, %s219
      %p221 = scmp.eq.s32.totalorder %s34, 0
      %p222 = por %p220, %p221
      %s224 = sadd.s32 %s223, 1
      %p227 = scmp.eq.s32.totalorder %s28, 3
      %p228 = scmp.ne.s32.totalorder %s223, %s225
      %p229 = scmp.eq.s32.totalorder %s28, 0
      %p230 = por %p228, %p229
      %p231 = scmp.ne.s32.totalorder %s223, %s225
      %p232 = scmp.eq.s32.totalorder %s33, 3
      %p233 = por %p231, %p232
      %p234 = scmp.ne.s32.totalorder %s225, %s226
      %p235 = scmp.eq.s32.totalorder %s33, 0
      %p236 = por %p234, %p235
      %p237 = scmp.ne.s32.totalorder %s225, %s226
      %p238 = scmp.eq.s32.totalorder %s34, 3
      %p239 = por %p237, %p238
      %p241 = scmp.ne.s32.totalorder %s226, %s240
      %p242 = scmp.eq.s32.totalorder %s34, 0
      %p243 = por %p241, %p242
      %s244 = ssub.s32 %s35, %s47
      %s245 = ssub.s32 %s36, %s43
      %s246 = sor.u32 %s244, %s245
      %p247 = scmp.eq.s32.totalorder %s246, 0
      %s249 = sadd.s32 %s248, 1
      %s250 = scalar_select %p247, %s248, %s249
      %p253 = pneg %p247
      %p254 = scmp.eq.s32.totalorder %s28, 3
      %p255 = por %p253, %p254
      %p256 = scmp.ne.s32.totalorder %s248, %s251
      %p257 = scmp.eq.s32.totalorder %s28, 0
      %p258 = por %p256, %p257
      %p259 = scmp.ne.s32.totalorder %s248, %s251
      %p260 = scmp.eq.s32.totalorder %s33, 3
      %p261 = por %p259, %p260
      %p262 = scmp.ne.s32.totalorder %s251, %s252
      %p263 = scmp.eq.s32.totalorder %s33, 0
      %p264 = por %p262, %p263
      %p265 = scmp.ne.s32.totalorder %s251, %s252
      %p266 = scmp.eq.s32.totalorder %s34, 3
      %p267 = por %p265, %p266
      %p269 = scmp.ne.s32.totalorder %s252, %s268
      %p270 = scmp.eq.s32.totalorder %s34, 0
      %p271 = por %p269, %p270
      %s272 = ssub.s32 %s35, %s47
      %s273 = ssub.s32 %s36, %s43
      %s274 = sor.u32 %s272, %s273
      %p275 = scmp.eq.s32.totalorder %s274, 0
      %s277 = sadd.s32 %s276, 1
      %s278 = scalar_select %p275, %s276, %s277
      %p281 = pneg %p275
      %p282 = scmp.eq.s32.totalorder %s28, 3
      %p283 = por %p281, %p282
      %p284 = scmp.ne.s32.totalorder %s276, %s279
      %p285 = scmp.eq.s32.totalorder %s28, 0
      %p286 = por %p284, %p285
      %p287 = scmp.ne.s32.totalorder %s276, %s279
      %p288 = scmp.eq.s32.totalorder %s33, 3
      %p289 = por %p287, %p288
      %p290 = scmp.ne.s32.totalorder %s279, %s280
      %p291 = scmp.eq.s32.totalorder %s33, 0
      %p292 = por %p290, %p291
      %p293 = scmp.ne.s32.totalorder %s279, %s280
      %p294 = scmp.eq.s32.totalorder %s34, 3
      %p295 = por %p293, %p294
      %p297 = scmp.ne.s32.totalorder %s280, %s296
      %p298 = scmp.eq.s32.totalorder %s34, 0
      %p299 = por %p297, %p298
      %s300 = ssub.s32 %s35, %s47
      %s301 = ssub.s32 %s36, %s43
      %s302 = sor.u32 %s300, %s301
      %p303 = scmp.eq.s32.totalorder %s302, 0
      %s305 = sadd.s32 %s304, 1
      %s306 = scalar_select %p303, %s304, %s305
      %p309 = pneg %p303
      %p310 = scmp.eq.s32.totalorder %s28, 3
      %p311 = por %p309, %p310
      %p312 = scmp.ne.s32.totalorder %s304, %s307
      %p313 = scmp.eq.s32.totalorder %s28, 0
      %p314 = por %p312, %p313
      %p315 = scmp.ne.s32.totalorder %s304, %s307
      %p316 = scmp.eq.s32.totalorder %s33, 3
      %p317 = por %p315, %p316
      %p318 = scmp.ne.s32.totalorder %s307, %s308
      %p319 = scmp.eq.s32.totalorder %s33, 0
      %p320 = por %p318, %p319
      %p321 = scmp.ne.s32.totalorder %s307, %s308
      %p322 = scmp.eq.s32.totalorder %s34, 3
      %p323 = por %p321, %p322
      %p325 = scmp.ne.s32.totalorder %s308, %s324
      %p326 = scmp.eq.s32.totalorder %s34, 0
      %p327 = por %p325, %p326
      %p328 = scmp.le.s32.totalorder 1, %s28
      %p329 = scmp.lt.s32.totalorder %s28, 5
      %p330 = pnand %p328, %p329
      %p331 = pneg %p330
      // Predicated region
      $region9: #{tpu_custom_call.1} parent=5 // pred_check
        _
      $region10: #{tpu_custom_call.1} parent=5 // pred_check_branch
        %333 = sbr.rel (%p330) target = $region12
      $region11: #{tpu_custom_call.1} parent=5 // pred_region
        %s334 = ssub.s32 %s28, 1
        // Predicated region
        $region13: #{tpu_custom_call.1} parent=11 // pred_check
          %p335 = pneg %p89
        $region14: #{tpu_custom_call.1} parent=11 // pred_check_branch
          %337 = sbr.rel (%p335) target = $region16
        $region15: #{tpu_custom_call.1} parent=11 // pred_region
          _
        $region16: #{tpu_custom_call.1} parent=11 // pred_fallthru
          _
        // Predicated region
        $region17: #{tpu_custom_call.1} parent=11 // pred_check
          %p338 = pneg %p110
        $region18: #{tpu_custom_call.1} parent=11 // pred_check_branch
          %340 = sbr.rel (%p338) target = $region20
        $region19: #{tpu_custom_call.1} parent=11 // pred_region
          _
        $region20: #{tpu_custom_call.1} parent=11 // pred_fallthru
          _
        // Predicated region
        $region21: #{tpu_custom_call.1} parent=11 // pred_check
          %p341 = pneg %p131
        $region22: #{tpu_custom_call.1} parent=11 // pred_check_branch
          %343 = sbr.rel (%p341) target = $region24
        $region23: #{tpu_custom_call.1} parent=11 // pred_region
          %s345 = ssub.s32 256, 256
          %346 = vsyncadd [#allocation6], %s345
          %s347 = sshll.u32 [#allocation5], 4
          %s348 = int_to_ptr.vmem [resolvable:$true] %s347
          %353 = dma.hbm_to_vmem [thread:$0]  %s3, 256, %s348, [#allocation6], 64, 64, 4
        $region24: #{tpu_custom_call.1} parent=11 // pred_fallthru
          _
        // Predicated region
        $region25: #{tpu_custom_call.1} parent=11 // pred_check
          %p354 = pneg %p152
        $region26: #{tpu_custom_call.1} parent=11 // pred_check_branch
          %356 = sbr.rel (%p354) target = $region28
        $region27: #{tpu_custom_call.1} parent=11 // pred_region
          %s358 = ssub.s32 256, 256
          %359 = vsyncadd [#allocation6], %s358
          %s360 = sshll.u32 [#allocation7], 4
          %s361 = int_to_ptr.vmem [resolvable:$true] %s360
          %366 = dma.hbm_to_vmem [thread:$0]  %s4, 256, %s361, [#allocation6], 64, 64, 4
        $region28: #{tpu_custom_call.1} parent=11 // pred_fallthru
          _
        // Predicated region
        $region29: #{tpu_custom_call.1} parent=11 // pred_check
          %p367 = pneg %p173
        $region30: #{tpu_custom_call.1} parent=11 // pred_check_branch
          %369 = sbr.rel (%p367) target = $region32
        $region31: #{tpu_custom_call.1} parent=11 // pred_region
          _
        $region32: #{tpu_custom_call.1} parent=11 // pred_fallthru
          _
        // Predicated region
        $region33: #{tpu_custom_call.1} parent=11 // pred_check
          %p370 = pneg %p194
        $region34: #{tpu_custom_call.1} parent=11 // pred_check_branch
          %372 = sbr.rel (%p370) target = $region36
        $region35: #{tpu_custom_call.1} parent=11 // pred_region
          _
        $region36: #{tpu_custom_call.1} parent=11 // pred_fallthru
          _
        // Predicated region
        $region37: #{tpu_custom_call.1} parent=11 // pred_check
          %p373 = pneg %p215
        $region38: #{tpu_custom_call.1} parent=11 // pred_check_branch
          %375 = sbr.rel (%p373) target = $region40
        $region39: #{tpu_custom_call.1} parent=11 // pred_region
          _
        $region40: #{tpu_custom_call.1} parent=11 // pred_fallthru
          _
        // Predicated region
        $region41: #{tpu_custom_call.1} parent=11 // pred_check
          %p376 = pneg %p236
        $region42: #{tpu_custom_call.1} parent=11 // pred_check_branch
          %378 = sbr.rel (%p376) target = $region44
        $region43: #{tpu_custom_call.1} parent=11 // pred_region
          _
        $region44: #{tpu_custom_call.1} parent=11 // pred_fallthru
          _
      $region12: #{tpu_custom_call.1} parent=5 // pred_fallthru
        _
      %p379 = scmp.lt.s32.totalorder %s28, 4
      // Predicated region
      $region45: #{tpu_custom_call.1} parent=5 // pred_check
        %p380 = pneg %p379
      $region46: #{tpu_custom_call.1} parent=5 // pred_check_branch
        %382 = sbr.rel (%p380) target = $region48
      $region47: #{tpu_custom_call.1} parent=5 // pred_region
        // Predicated region
        $region49: #{tpu_custom_call.1} parent=47 // pred_check
          %p383 = pneg %p62
        $region50: #{tpu_custom_call.1} parent=47 // pred_check_branch
          %385 = sbr.rel (%p383) target = $region52
        $region51: #{tpu_custom_call.1} parent=47 // pred_region
          %s386 = sand.u32 %s52, 1
          %s387 = scalar_lea.sflag [#allocation3], %s386
          %s388 = sand.u32 %s52, 1
          %s389 = smul.addr %s388, 4
          %s390 = scalar_lea.vmem [#allocation2], %s389
          %s392 = ssub.s32 64, 64
          %393 = vsyncadd %s387, %s392
          %s394 = smul.addr %s35, 2
          %s395 = sadd.s32 %s36, %s394
          %s396 = smul.addr %s395, 64
          %s397 = scalar_lea.hbm %s0, %s396
          %s399 = sshll.u32 %s390, 4
          %s400 = int_to_ptr.vmem [resolvable:$true] %s399
          %402 = dma.hbm_to_vmem [thread:$0]  %s397, 64, %s400, %s387
        $region52: #{tpu_custom_call.1} parent=47 // pred_fallthru
          _
      $region48: #{tpu_custom_call.1} parent=5 // pred_fallthru
        _
      %p403 = scmp.le.s32.totalorder 1, %s28
      %p404 = scmp.lt.s32.totalorder %s28, 5
      %p405 = pnand %p403, %p404
      %p406 = pneg %p405
      // Predicated region
      $region53: #{tpu_custom_call.1} parent=5 // pred_check
        _
      $region54: #{tpu_custom_call.1} parent=5 // pred_check_branch
        %408 = sbr.rel (%p405) target = $region56
      $region55: #{tpu_custom_call.1} parent=5 // pred_region
        %s409 = ssub.s32 %s28, 1
        %s410 = sand.u32 %s55, 1
        %s411 = scalar_lea.sflag [#allocation3], %s410
        %s412 = sand.u32 %s55, 1
        %s413 = smul.addr %s412, 4
        %s414 = scalar_lea.vmem [#allocation2], %s413
        // Predicated region
        $region57: #{tpu_custom_call.1} parent=55 // pred_check
          %p415 = pneg %p68
        $region58: #{tpu_custom_call.1} parent=55 // pred_check_branch
          %417 = sbr.rel (%p415) target = $region60
        $region59: #{tpu_custom_call.1} parent=55 // pred_region
          %418 = dma.done %s411, 64
        $region60: #{tpu_custom_call.1} parent=55 // pred_fallthru
          _
        // Predicated region
        $region61: #{tpu_custom_call.1} parent=55 // pred_check
          %p419 = pneg %p131
        $region62: #{tpu_custom_call.1} parent=55 // pred_check_branch
          %421 = sbr.rel (%p419) target = $region64
        $region63: #{tpu_custom_call.1} parent=55 // pred_region
          %422 = dma.done [#allocation6], 256
        $region64: #{tpu_custom_call.1} parent=55 // pred_fallthru
          _
        // Predicated region
        $region65: #{tpu_custom_call.1} parent=55 // pred_check
          %p423 = pneg %p152
        $region66: #{tpu_custom_call.1} parent=55 // pred_check_branch
          %425 = sbr.rel (%p423) target = $region68
        $region67: #{tpu_custom_call.1} parent=55 // pred_region
          %426 = dma.done [#allocation6], 256
        $region68: #{tpu_custom_call.1} parent=55 // pred_fallthru
          _
        %s427 = sand.u32 %s55, 1
        %s428 = scalar_lea.sflag [#allocation3], %s427
        %s429 = sand.u32 %s55, 1
        %s430 = smul.addr %s429, 4
        %s431 = scalar_lea.vmem [#allocation2], %s430
        %p432 = pneg %p68
        %p433 = pneg %p65
        %p434 = pneg %p89
        %p435 = pneg %p86
        %p436 = pneg %p110
        %p437 = pneg %p107
        %p438 = pneg %p131
        %p439 = pneg %p128
        %p440 = pneg %p152
        %p441 = pneg %p149
        %p442 = pneg %p173
        %p443 = pneg %p170
        %p444 = pneg %p194
        %p445 = pneg %p191
        %p446 = pneg %p215
        %p447 = pneg %p212
        %p448 = pneg %p236
        %p449 = pneg %p233
        %p450 = pneg %p264
        %p451 = pneg %p261
        %s452 = sand.u32 %s251, 1
        %s453 = scalar_lea.sflag [#allocation4], %s452
        %s454 = sand.u32 %s251, 1
        %s455 = smul.addr %s454, 4
        %s456 = scalar_lea.vmem [#allocation8], %s455
        %p457 = pneg %p292
        %p458 = pneg %p289
        %s459 = sand.u32 %s33, 1
        %s460 = scalar_lea.sflag [#allocation10], %s459
        %s461 = sand.u32 %s279, 1
        %s462 = smul.addr %s461, 4
        %s463 = scalar_lea.vmem [#allocation9], %s462
        %p464 = pneg %p320
        %p465 = pneg %p317
        %s466 = sand.u32 %s33, 1
        %s467 = scalar_lea.sflag [#allocation10], %s466
        %s468 = sand.u32 %s307, 1
        %s469 = smul.addr %s468, 4
        %s470 = scalar_lea.vmem [#allocation11], %s469
        %v472 = vld [vmem:[%s414] sm:$0xf]
        %v473 = vunpack.c.l.bf16 %v472
        %v474 = vld [vmem:[%s1] sm:$0x1]
        %v475 = vld [vmem:[%s2] sm:$0x1]
        %vm476 = vcmask 261120
        %v477 = vsel %vm476, %v473, 0.0
        %478 = vadd.xlane.f32.xlu0 %v477
        %v479 = vpop.xlane.xlu0 %478
        %v480 = vrcp.pop 32.0
        %v481 = vmul.f32 %v479, %v480
        %v482 = vsub.f32 %v473, %v481
        %v483 = vmul.f32 %v482, %v482
        %v484 = vsel %vm476, %v483, 0.0
        %485 = vadd.xlane.f32.xlu0 %v484
        %v486 = vpop.xlane.xlu0 %485
        %v487 = vmul.f32 %v486, %v480
        %v488 = vadd.f32 %v487, 1e-05
        %v489 = vrsqrt.pop %v488
        %v490 = vmul.f32 %v482, %v489
        %v492 = vlaneseq
        %v493 = vshrl.u32 %v492, 7
        %v494 = vsub.s32 0, %v493
        %v495 = vrot.slane %v474, %v494
        %v497 = vmul.f32 %v490, %v495
        %v499 = vlaneseq
        %v500 = vshrl.u32 %v499, 7
        %v501 = vsub.s32 0, %v500
        %v502 = vrot.slane %v475, %v501
        %v504 = vadd.f32 %v497, %v502
        %v505 = vpack.c.bf16 %v504, %v504
        %v506 = vld [vmem:[#allocation5] sm:$0xf]
        %v507 = vld [vmem:[#allocation5 + $0x4] sm:$0xf]
        %v508 = vld [vmem:[#allocation5 + $0x8] sm:$0xf]
        %v509 = vld [vmem:[#allocation5 + $0xc] sm:$0xf]
        %v510 = vld [vmem:[%s6] sm:$0x1]
        %v512 = vlaneseq
        %v513 = vshrl.u32 %v512, 7
        %v514 = vsub.s32 0, %v513
        %v515 = vrot.slane %v510, %v514
        %v521 = vunpack.c.l.b16 %v506
        %v522 = vunpack.c.l.b16 %v507
        %v523 = vunpack.c.l.b16 %v508
        %v524 = vunpack.c.l.b16 %v509
        %v525 = vpack.c.b16 %v522, %v521
        %v526 = vpack.c.b16 %v524, %v523
        %v530 = vsel %vm476, %v505, 0
        %532 = vmatprep.subr.bf16.mxu0 0
        %533 = vmatpush1.bf16.msra.mxu0 %v525
        %534 = vmatprep.subr.bf16.mxu0 0
        %535 = vmatpush1.bf16.msra.mxu0 %v526
        %536 = vmatprep.subr.bf16.mxu0 0
        %537 = vmatpush1.bf16.msra.mxu0 0
        %538 = vmatprep.subr.bf16.mxu0 0
        %539 = vmatpush1.bf16.msra.mxu0 0
        %540 = vmatprep.subr.bf16.mxu0 0
        %541 = vmatpush1.bf16.msra.mxu0 0
        %542 = vmatprep.subr.bf16.mxu0 0
        %543 = vmatpush1.bf16.msra.mxu0 0
        %544 = vmatprep.subr.bf16.mxu0 0
        %545 = vmatpush1.bf16.msra.mxu0 0
        %546 = vmatprep.subr.bf16.mxu0 0
        %547 = vmatpush1.bf16.msra.mxu0 0
        %548 = vmatprep.subr.bf16.mxu0 0
        %549 = vmatpush1.bf16.msra.mxu0 0
        %550 = vmatprep.subr.bf16.mxu0 0
        %551 = vmatpush1.bf16.msra.mxu0 0
        %552 = vmatprep.subr.bf16.mxu0 0
        %553 = vmatpush1.bf16.msra.mxu0 0
        %554 = vmatprep.subr.bf16.mxu0 0
        %555 = vmatpush1.bf16.msra.mxu0 0
        %556 = vmatprep.subr.bf16.mxu0 0
        %557 = vmatpush1.bf16.msra.mxu0 0
        %558 = vmatprep.subr.bf16.mxu0 0
        %559 = vmatpush1.bf16.msra.mxu0 0
        %560 = vmatprep.subr.bf16.mxu0 0
        %561 = vmatpush1.bf16.msra.mxu0 0
        %562 = vmatprep.subr.bf16.mxu0 0
        %563 = vmatpush1.bf16.msra.mxu0 0
        %564 = vmatprep.mubr.bf16.mxu0 0
        %565 = vmatmul.mubr.bf16.gmra.mrb[0].mxu0 %v530
        %v566 = vpop.f32.mrb[0].mxu0
        %v567 = vadd.f32 %v515, %v566
        %v568 = vpop.f32.mrb[0].mxu0
        %v569 = vpop.f32.mrb[0].mxu0
        %v570 = vpop.f32.mrb[0].mxu0
        %571 = vdwg.mxu0
        %v572 = vpack.c.bf16 %v567, %v567
        %vm573 = vcmask 257024
        %574 = vst.msk [vmem:[%s456] sm:$0xf] %vm573, %v572
        %v575 = vld [vmem:[#allocation7] sm:$0xf]
        %v576 = vld [vmem:[#allocation7 + $0x4] sm:$0xf]
        %v577 = vld [vmem:[#allocation7 + $0x8] sm:$0xf]
        %v578 = vld [vmem:[#allocation7 + $0xc] sm:$0xf]
        %v579 = vld [vmem:[%s7] sm:$0x1]
        %v581 = vlaneseq
        %v582 = vshrl.u32 %v581, 7
        %v583 = vsub.s32 0, %v582
        %v584 = vrot.slane %v579, %v583
        %v590 = vunpack.c.l.b16 %v575
        %v591 = vunpack.c.l.b16 %v576
        %v592 = vunpack.c.l.b16 %v577
        %v593 = vunpack.c.l.b16 %v578
        %v594 = vpack.c.b16 %v591, %v590
        %v595 = vpack.c.b16 %v593, %v592
        %598 = vmatprep.subr.bf16.mxu0 0
        %599 = vmatpush1.bf16.msra.mxu0 %v594
        %600 = vmatprep.subr.bf16.mxu0 0
        %601 = vmatpush1.bf16.msra.mxu0 %v595
        %602 = vmatprep.subr.bf16.mxu0 0
        %603 = vmatpush1.bf16.msra.mxu0 0
        %604 = vmatprep.subr.bf16.mxu0 0
        %605 = vmatpush1.bf16.msra.mxu0 0
        %606 = vmatprep.subr.bf16.mxu0 0
        %607 = vmatpush1.bf16.msra.mxu0 0
        %608 = vmatprep.subr.bf16.mxu0 0
        %609 = vmatpush1.bf16.msra.mxu0 0
        %610 = vmatprep.subr.bf16.mxu0 0
        %611 = vmatpush1.bf16.msra.mxu0 0
        %612 = vmatprep.subr.bf16.mxu0 0
        %613 = vmatpush1.bf16.msra.mxu0 0
        %614 = vmatprep.subr.bf16.mxu0 0
        %615 = vmatpush1.bf16.msra.mxu0 0
        %616 = vmatprep.subr.bf16.mxu0 0
        %617 = vmatpush1.bf16.msra.mxu0 0
        %618 = vmatprep.subr.bf16.mxu0 0
        %619 = vmatpush1.bf16.msra.mxu0 0
        %620 = vmatprep.subr.bf16.mxu0 0
        %621 = vmatpush1.bf16.msra.mxu0 0
        %622 = vmatprep.subr.bf16.mxu0 0
        %623 = vmatpush1.bf16.msra.mxu0 0
        %624 = vmatprep.subr.bf16.mxu0 0
        %625 = vmatpush1.bf16.msra.mxu0 0
        %626 = vmatprep.subr.bf16.mxu0 0
        %627 = vmatpush1.bf16.msra.mxu0 0
        %628 = vmatprep.subr.bf16.mxu0 0
        %629 = vmatpush1.bf16.msra.mxu0 0
        %630 = vmatprep.mubr.bf16.mxu0 0
        %631 = vmatmul.mubr.bf16.gmra.mrb[0].mxu0 %v530
        %v632 = vpop.f32.mrb[0].mxu0
        %v633 = vadd.f32 %v584, %v632
        %v634 = vpop.f32.mrb[0].mxu0
        %v635 = vpop.f32.mrb[0].mxu0
        %v636 = vpop.f32.mrb[0].mxu0
        %637 = vdwg.mxu0
        %v638 = vpack.c.bf16 %v633, %v633
        %639 = vst.msk [vmem:[%s463] sm:$0xf] %vm573, %v638
        %v640 = vld [vmem:[%s5] sm:$0xf]
        %v641 = vld [vmem:[%s5 + $0x4] sm:$0xf]
        %v642 = vld [vmem:[%s5 + $0x8] sm:$0xf]
        %v643 = vld [vmem:[%s5 + $0xc] sm:$0xf]
        %v644 = vld [vmem:[%s8] sm:$0x1]
        %v646 = vlaneseq
        %v647 = vshrl.u32 %v646, 7
        %v648 = vsub.s32 0, %v647
        %v649 = vrot.slane %v644, %v648
        %v655 = vunpack.c.l.b16 %v640
        %v656 = vunpack.c.l.b16 %v641
        %v657 = vunpack.c.l.b16 %v642
        %v658 = vunpack.c.l.b16 %v643
        %v659 = vpack.c.b16 %v656, %v655
        %v660 = vpack.c.b16 %v658, %v657
        %663 = vmatprep.subr.bf16.mxu0 0
        %664 = vmatpush1.bf16.msra.mxu0 %v659
        %665 = vmatprep.subr.bf16.mxu0 0
        %666 = vmatpush1.bf16.msra.mxu0 %v660
        %667 = vmatprep.subr.bf16.mxu0 0
        %668 = vmatpush1.bf16.msra.mxu0 0
        %669 = vmatprep.subr.bf16.mxu0 0
        %670 = vmatpush1.bf16.msra.mxu0 0
        %671 = vmatprep.subr.bf16.mxu0 0
        %672 = vmatpush1.bf16.msra.mxu0 0
        %673 = vmatprep.subr.bf16.mxu0 0
        %674 = vmatpush1.bf16.msra.mxu0 0
        %675 = vmatprep.subr.bf16.mxu0 0
        %676 = vmatpush1.bf16.msra.mxu0 0
        %677 = vmatprep.subr.bf16.mxu0 0
        %678 = vmatpush1.bf16.msra.mxu0 0
        %679 = vmatprep.subr.bf16.mxu0 0
        %680 = vmatpush1.bf16.msra.mxu0 0
        %681 = vmatprep.subr.bf16.mxu0 0
        %682 = vmatpush1.bf16.msra.mxu0 0
        %683 = vmatprep.subr.bf16.mxu0 0
        %684 = vmatpush1.bf16.msra.mxu0 0
        %685 = vmatprep.subr.bf16.mxu0 0
        %686 = vmatpush1.bf16.msra.mxu0 0
        %687 = vmatprep.subr.bf16.mxu0 0
        %688 = vmatpush1.bf16.msra.mxu0 0
        %689 = vmatprep.subr.bf16.mxu0 0
        %690 = vmatpush1.bf16.msra.mxu0 0
        %691 = vmatprep.subr.bf16.mxu0 0
        %692 = vmatpush1.bf16.msra.mxu0 0
        %693 = vmatprep.subr.bf16.mxu0 0
        %694 = vmatpush1.bf16.msra.mxu0 0
        %695 = vmatprep.mubr.bf16.mxu0 0
        %696 = vmatmul.mubr.bf16.gmra.mrb[0].mxu0 %v530
        %v697 = vpop.f32.mrb[0].mxu0
        %v698 = vadd.f32 %v649, %v697
        %v699 = vpop.f32.mrb[0].mxu0
        %v700 = vpop.f32.mrb[0].mxu0
        %v701 = vpop.f32.mrb[0].mxu0
        %702 = vdwg.mxu0
        %v703 = vpack.c.bf16 %v698, %v698
        %704 = vst.msk [vmem:[%s470] sm:$0xf] %vm573, %v703
        %s705 = sand.u32 %s251, 1
        %s706 = scalar_lea.sflag [#allocation4], %s705
        %s707 = sand.u32 %s251, 1
        %s708 = smul.addr %s707, 4
        %s709 = scalar_lea.vmem [#allocation8], %s708
        %s710 = sand.u32 %s33, 1
        %s711 = scalar_lea.sflag [#allocation10], %s710
        %s712 = sand.u32 %s279, 1
        %s713 = smul.addr %s712, 4
        %s714 = scalar_lea.vmem [#allocation9], %s713
        %s715 = sand.u32 %s33, 1
        %s716 = scalar_lea.sflag [#allocation10], %s715
        %s717 = sand.u32 %s307, 1
        %s718 = smul.addr %s717, 4
        %s719 = scalar_lea.vmem [#allocation11], %s718
        // Predicated region
        $region69: #{tpu_custom_call.1} parent=55 // pred_check
          %p720 = pneg %p261
        $region70: #{tpu_custom_call.1} parent=55 // pred_check_branch
          %722 = sbr.rel (%p720) target = $region72
        $region71: #{tpu_custom_call.1} parent=55 // pred_region
          %s724 = ssub.s32 64, 64
          %725 = vsyncadd %s706, %s724
          %s726 = smul.addr %s37, 2
          %s727 = sadd.s32 %s38, %s726
          %s728 = smul.addr %s727, 64
          %s729 = scalar_lea.hbm %s9, %s728
          %s731 = sshll.u32 %s709, 4
          %s732 = int_to_ptr.vmem [resolvable:$true] %s731
          %734 = dma.vmem_to_hbm [thread:$0]  %s732, 64, %s729, %s706
        $region72: #{tpu_custom_call.1} parent=55 // pred_fallthru
          _
        // Predicated region
        $region73: #{tpu_custom_call.1} parent=55 // pred_check
          %p735 = pneg %p289
        $region74: #{tpu_custom_call.1} parent=55 // pred_check_branch
          %737 = sbr.rel (%p735) target = $region76
        $region75: #{tpu_custom_call.1} parent=55 // pred_region
          %s739 = ssub.s32 64, 64
          %740 = vsyncadd %s711, %s739
          %s741 = smul.addr %s37, 2
          %s742 = sadd.s32 %s38, %s741
          %s743 = smul.addr %s742, 64
          %s744 = scalar_lea.hbm %s10, %s743
          %s746 = sshll.u32 %s714, 4
          %s747 = int_to_ptr.vmem [resolvable:$true] %s746
          %749 = dma.vmem_to_hbm [thread:$0]  %s747, 64, %s744, %s711
        $region76: #{tpu_custom_call.1} parent=55 // pred_fallthru
          _
        // Predicated region
        $region77: #{tpu_custom_call.1} parent=55 // pred_check
          %p750 = pneg %p317
        $region78: #{tpu_custom_call.1} parent=55 // pred_check_branch
          %752 = sbr.rel (%p750) target = $region80
        $region79: #{tpu_custom_call.1} parent=55 // pred_region
          %s754 = ssub.s32 64, 64
          %755 = vsyncadd %s716, %s754
          %s756 = smul.addr %s37, 2
          %s757 = sadd.s32 %s38, %s756
          %s758 = smul.addr %s757, 64
          %s759 = scalar_lea.hbm %s11, %s758
          %s761 = sshll.u32 %s719, 4
          %s762 = int_to_ptr.vmem [resolvable:$true] %s761
          %764 = dma.vmem_to_hbm [thread:$0]  %s762, 64, %s759, %s716
        $region80: #{tpu_custom_call.1} parent=55 // pred_fallthru
          _
      $region56: #{tpu_custom_call.1} parent=5 // pred_fallthru
        _
      %p765 = scmp.le.s32.totalorder 2, %s28
      // Predicated region
      $region81: #{tpu_custom_call.1} parent=5 // pred_check
        %p766 = pneg %p765
      $region82: #{tpu_custom_call.1} parent=5 // pred_check_branch
        %768 = sbr.rel (%p766) target = $region84
      $region83: #{tpu_custom_call.1} parent=5 // pred_region
        %s769 = ssub.s32 %s28, 2
        // Predicated region
        $region85: #{tpu_custom_call.1} parent=83 // pred_check
          %p770 = pneg %p267
        $region86: #{tpu_custom_call.1} parent=83 // pred_check_branch
          %772 = sbr.rel (%p770) target = $region88
        $region87: #{tpu_custom_call.1} parent=83 // pred_region
          %s773 = sand.u32 %s252, 1
          %s774 = scalar_lea.sflag [#allocation4], %s773
          %s775 = sand.u32 %s252, 1
          %s776 = smul.addr %s775, 4
          %s777 = scalar_lea.vmem [#allocation8], %s776
          %778 = dma.done %s774, 64
        $region88: #{tpu_custom_call.1} parent=83 // pred_fallthru
          _
        // Predicated region
        $region89: #{tpu_custom_call.1} parent=83 // pred_check
          %p779 = pneg %p295
        $region90: #{tpu_custom_call.1} parent=83 // pred_check_branch
          %781 = sbr.rel (%p779) target = $region92
        $region91: #{tpu_custom_call.1} parent=83 // pred_region
          %s782 = sand.u32 %s34, 1
          %s783 = scalar_lea.sflag [#allocation10], %s782
          %s784 = sand.u32 %s280, 1
          %s785 = smul.addr %s784, 4
          %s786 = scalar_lea.vmem [#allocation9], %s785
          %787 = dma.done %s783, 64
        $region92: #{tpu_custom_call.1} parent=83 // pred_fallthru
          _
        // Predicated region
        $region93: #{tpu_custom_call.1} parent=83 // pred_check
          %p788 = pneg %p323
        $region94: #{tpu_custom_call.1} parent=83 // pred_check_branch
          %790 = sbr.rel (%p788) target = $region96
        $region95: #{tpu_custom_call.1} parent=83 // pred_region
          %s791 = sand.u32 %s34, 1
          %s792 = scalar_lea.sflag [#allocation10], %s791
          %s793 = sand.u32 %s308, 1
          %s794 = smul.addr %s793, 4
          %s795 = scalar_lea.vmem [#allocation11], %s794
          %796 = dma.done %s792, 64
        $region96: #{tpu_custom_call.1} parent=83 // pred_fallthru
          _
      $region84: #{tpu_custom_call.1} parent=5 // pred_fallthru
        _
    $region6: #{tpu_custom_call.1} parent=1 // loop_footer
      %s32 = sadd.s32 1, %s28
    $region7: #{tpu_custom_call.1} parent=1 // loop_footer_branch
      %27 = sbr.rel target = $region3
    $region8: #{tpu_custom_call.1} parent=1 // loop_exit
      _
    %797 = vsyncpa [#allocation3], 1
    %s798 = scalar_lea.sflag [#allocation3], 1
    %799 = vsyncpa %s798, 1
    %800 = vsyncpa [#allocation6], 1
    %801 = vsyncpa [#allocation4], 1
    %s802 = scalar_lea.sflag [#allocation4], 1
    %803 = vsyncpa %s802, 1
    %804 = vsyncpa [#allocation10], 1
    %s805 = scalar_lea.sflag [#allocation10], 1
    %806 = vsyncpa %s805, 1

</llo_original>
